<compile_context>
chip_gen: v7x
topology: tpu7x:2x2x1
jax: 0.10.0
libtpu: 0.0.40
codegen_flags: <defaults>
</compile_context>

<pallas_src>
import jax
import jax.numpy as jnp
from jax.experimental import pallas as pl
from jax.experimental.pallas import tpu as pltpu

_HIGHEST = jax.lax.Precision.HIGHEST


def cross_attention_kernel(x0_ref, x1_ref, wg_ref, bg_ref, wtp_ref, btp_ref,
                           wout_ref, bout_ref, out_ref):
    D = wg_ref.shape[1]

    x0 = x0_ref[...]                                          # (R, C)
    x1 = x1_ref[...]                                          # (R, C)

    # --- projections: g from x0, fused [theta | phi] from x1 (2 MXU matmuls)
    g = jnp.dot(x0, wg_ref[...], precision=_HIGHEST,
                preferred_element_type=jnp.float32) + bg_ref[...]        # (R, D)
    tp = jnp.dot(x1, wtp_ref[...], precision=_HIGHEST,
                 preferred_element_type=jnp.float32) + btp_ref[...]      # (R, 2D)
    theta = tp[:, :D]                                         # theta(x1)  (R, D)
    phi = tp[:, D:]                                           # phi(x1)    (R, D)

    # --- softmax over j of f[b,i,j] = phi[b,i] * theta[b,j] ------------------
    # closed-form row max (exact for a rank-1 outer product): no (R,D,D) max.
    t_max = jnp.max(theta, axis=-1, keepdims=True)            # (R, 1)
    t_min = jnp.min(theta, axis=-1, keepdims=True)            # (R, 1)
    row_max = jnp.where(phi >= 0.0, phi * t_max, phi * t_min)  # (R, D)

    p = jnp.exp(phi[:, :, None] * theta[:, None, :]
                - row_max[:, :, None])                        # (R, D, D)

    # numerator / denominator reduced from the same exp tensor; f_div_C is
    # never materialized.  Exact divide (EUP reciprocal + mul, full precision).
    numer = jnp.sum(p * g[:, None, :], axis=-1)               # (R, D)
    denom = jnp.sum(p, axis=-1)                               # (R, D)
    y = numer / denom                                         # (R, D)

    # --- output projection + residual ----------------------------------------
    w_y = jnp.dot(y, wout_ref[...], precision=_HIGHEST,
                  preferred_element_type=jnp.float32) + bout_ref[...]    # (R, C)
    out_ref[...] = (w_y + x0).astype(out_ref.dtype)


def prepare_params(params):
    """Fuse/transpose PyTorch-layout params ONCE (outside the per-call path).

    params = (wg, bg, wt, bt, wp, bp, ww, bw); weights in nn.Linear layout
    (out, in), biases (out,)."""
    wg, bg, wt, bt, wp, bp, ww, bw = params
    D, C = wg.shape
    w_g = wg.T                                                # (C, D)
    b_g = bg.reshape(1, D)                                    # (1, D)
    w_tp = jnp.concatenate([wt.T, wp.T], axis=1)              # (C, 2D)
    b_tp = jnp.concatenate([bt, bp]).reshape(1, 2 * D)        # (1, 2D)
    w_out = ww.T                                              # (D, C)
    b_out = bw.reshape(1, C)                                  # (1, C)
    return w_g, b_g, w_tp, b_tp, w_out, b_out


def _pick_block_b(batch):
    # Block of rows per grid step.  block == full batch dim is always a legal
    # block shape; above 256 rows use a multiple-of-8 tile (sublane rule) so
    # the (R, D, D) exp tensor and the double-buffered inputs stay in VMEM
    # (budgeted for v7x's 64 MiB; see module TODO for flash-style j-tiling).
    return batch if batch <= 256 else 256


def cross_attention_block(x0, x1, fused_params):
    """x0, x1: (B, C). fused_params from prepare_params (cached across calls)."""
    B, C = x0.shape
    w_g, b_g, w_tp, b_tp, w_out, b_out = fused_params
    D = w_g.shape[1]                       # derived from weights, not C // 8

    block_b = _pick_block_b(B)
    grid = (pl.cdiv(B, block_b),)

    flops = int(2 * B * C * D              # g projection
                + 2 * B * C * 2 * D        # [theta | phi] projection
                + 2 * B * D * C            # output projection
                + 6 * B * D * D)           # outer product + reductions
    transcendentals = int(B * D * D)       # exp
    bytes_accessed = int(4 * (3 * B * C                 # x0, x1, out
                              + C * 3 * D + 3 * D       # Wg, Wt|Wp, biases
                              + D * C + C))             # W, bias

    return pl.pallas_call(
        cross_attention_kernel,
        out_shape=jax.ShapeDtypeStruct((B, C), x0.dtype),
        grid=grid,
        in_specs=[
            pl.BlockSpec((block_b, C), lambda i: (i, 0)),    # x0
            pl.BlockSpec((block_b, C), lambda i: (i, 0)),    # x1
            pl.BlockSpec((C, D), lambda i: (0, 0)),          # Wg^T
            pl.BlockSpec((1, D), lambda i: (0, 0)),          # bg
            pl.BlockSpec((C, 2 * D), lambda i: (0, 0)),      # [Wt^T | Wp^T]
            pl.BlockSpec((1, 2 * D), lambda i: (0, 0)),      # [bt | bp]
            pl.BlockSpec((D, C), lambda i: (0, 0)),          # W^T
            pl.BlockSpec((1, C), lambda i: (0, 0)),          # bW
        ],
        out_specs=pl.BlockSpec((block_b, C), lambda i: (i, 0)),
        compiler_params=pltpu.CompilerParams(
            dimension_semantics=("parallel",)),
        cost_estimate=pl.CostEstimate(flops=flops,
                                      transcendentals=transcendentals,
                                      bytes_accessed=bytes_accessed),
    )(x0, x1, w_g, b_g, w_tp, b_tp, w_out, b_out)


def _xavier_uniform(key, shape):
    # PyTorch xavier_uniform_ on a Linear weight of shape (out, in)
    fan_out, fan_in = shape
    limit = (6.0 / (fan_in + fan_out)) ** 0.5
    return jax.random.uniform(key, shape, jnp.float32, -limit, limit)


def _reference(x0, x1, params):
    wg, bg, wt, bt, wp, bp, ww, bw = params
    g_x = jnp.dot(x0, wg.T, precision=_HIGHEST) + bg           # (B, D)
    theta = jnp.dot(x1, wt.T, precision=_HIGHEST) + bt         # (B, D)
    phi = jnp.dot(x1, wp.T, precision=_HIGHEST) + bp           # (B, D)
    f = phi[:, :, None] * theta[:, None, :]                    # (B, D, D)
    f_div_c = jax.nn.softmax(f, axis=-1)
    y = jnp.einsum("bij,bj->bi", f_div_c, g_x, precision=_HIGHEST)
    return jnp.dot(y, ww.T, precision=_HIGHEST) + bw + x0


if __name__ == "__main__":
    B, C = 2, 32                # in_channels = 32, inner dim D = 4
    D = C // 8

    key = jax.random.PRNGKey(0)
    kx0, kx1, kg, kt, kp, kw = jax.random.split(key, 6)

    x0 = jax.random.normal(kx0, (B, C), jnp.float32)
    x1 = jax.random.normal(kx1, (B, C), jnp.float32)

    wg = _xavier_uniform(kg, (D, C)); bg = jnp.zeros((D,), jnp.float32)
    wt = _xavier_uniform(kt, (D, C)); bt = jnp.zeros((D,), jnp.float32)
    wp = _xavier_uniform(kp, (D, C)); bp = jnp.zeros((D,), jnp.float32)
    ww = _xavier_uniform(kw, (C, D)); bw = jnp.zeros((C,), jnp.float32)
    params = (wg, bg, wt, bt, wp, bp, ww, bw)

    # weight fusion / transposition happens once, not per call
    fused = prepare_params(params)

    block = jax.jit(cross_attention_block)
    z = block(x0, x1, fused)
    jax.block_until_ready(z)

    z_ref = _reference(x0, x1, params)
    assert z.shape == (B, C)
    err = float(jnp.max(jnp.abs(z - z_ref)))
    assert err < 2e-3, f"mismatch vs reference: max abs err = {err:.3e}"

    print("KERNEL_OK")
</pallas_src>

<mosaic_0001>
module attributes {stable_mosaic.version = 11 : i64} {
  func.func @cross_attention_kernel(%arg0: i32, %arg1: memref<2x32xf32, #tpu.memory_space<vmem>>, %arg2: memref<2x32xf32, #tpu.memory_space<vmem>>, %arg3: memref<32x4xf32, #tpu.memory_space<vmem>>, %arg4: memref<1x4xf32, #tpu.memory_space<vmem>>, %arg5: memref<32x8xf32, #tpu.memory_space<vmem>>, %arg6: memref<1x8xf32, #tpu.memory_space<vmem>>, %arg7: memref<4x32xf32, #tpu.memory_space<vmem>>, %arg8: memref<1x32xf32, #tpu.memory_space<vmem>>, %arg9: memref<2x32xf32, #tpu.memory_space<vmem>>) attributes {dimension_semantics = [#tpu.dimension_semantics<parallel>], iteration_bounds = array<i64: 1>, scalar_prefetch = 0 : i64, scratch_operands = 0 : i64, tpu.core_type = #tpu.core_type<tc>, window_params = [{transform_indices = @transform_0, window_bounds = array<i64: 2, 32>}, {transform_indices = @transform_1, window_bounds = array<i64: 2, 32>}, {pipeline_mode = #tpu.pipeline_mode<synchronous>, transform_indices = @transform_2, window_bounds = array<i64: 32, 4>}, {pipeline_mode = #tpu.pipeline_mode<synchronous>, transform_indices = @transform_3, window_bounds = array<i64: 1, 4>}, {pipeline_mode = #tpu.pipeline_mode<synchronous>, transform_indices = @transform_4, window_bounds = array<i64: 32, 8>}, {pipeline_mode = #tpu.pipeline_mode<synchronous>, transform_indices = @transform_5, window_bounds = array<i64: 1, 8>}, {pipeline_mode = #tpu.pipeline_mode<synchronous>, transform_indices = @transform_6, window_bounds = array<i64: 4, 32>}, {pipeline_mode = #tpu.pipeline_mode<synchronous>, transform_indices = @transform_7, window_bounds = array<i64: 1, 32>}, {transform_indices = @transform_8, window_bounds = array<i64: 2, 32>}]} {
    %c0 = arith.constant 0 : index
    %c0_0 = arith.constant 0 : index
    %0 = vector.load %arg1[%c0, %c0_0] : memref<2x32xf32, #tpu.memory_space<vmem>>, vector<2x32xf32>
    %c0_1 = arith.constant 0 : index
    %c0_2 = arith.constant 0 : index
    %1 = vector.load %arg2[%c0_1, %c0_2] : memref<2x32xf32, #tpu.memory_space<vmem>>, vector<2x32xf32>
    %c0_3 = arith.constant 0 : index
    %c0_4 = arith.constant 0 : index
    %2 = vector.load %arg3[%c0_3, %c0_4] : memref<32x4xf32, #tpu.memory_space<vmem>>, vector<32x4xf32>
    %cst = arith.constant dense<0.000000e+00> : vector<2x4xf32>
    %3 = tpu.matmul %0, %2, %cst {dimension_numbers = #tpu.dot_dimension_numbers<[1], [0], [0], [1], [0, 0, 1, 1], [], []>, precision = #tpu.contract_precision<fp32>} : vector<2x32xf32>, vector<32x4xf32>, vector<2x4xf32> -> vector<2x4xf32>
    %c0_5 = arith.constant 0 : index
    %c0_6 = arith.constant 0 : index
    %4 = vector.load %arg4[%c0_5, %c0_6] : memref<1x4xf32, #tpu.memory_space<vmem>>, vector<1x4xf32>
    %5 = vector.broadcast %4 : vector<1x4xf32> to vector<2x4xf32>
    %6 = arith.addf %3, %5 : vector<2x4xf32>
    %c0_7 = arith.constant 0 : index
    %c0_8 = arith.constant 0 : index
    %7 = vector.load %arg5[%c0_7, %c0_8] : memref<32x8xf32, #tpu.memory_space<vmem>>, vector<32x8xf32>
    %cst_9 = arith.constant dense<0.000000e+00> : vector<2x8xf32>
    %8 = tpu.matmul %1, %7, %cst_9 {dimension_numbers = #tpu.dot_dimension_numbers<[1], [0], [0], [1], [0, 0, 1, 1], [], []>, precision = #tpu.contract_precision<fp32>} : vector<2x32xf32>, vector<32x8xf32>, vector<2x8xf32> -> vector<2x8xf32>
    %c0_10 = arith.constant 0 : index
    %c0_11 = arith.constant 0 : index
    %9 = vector.load %arg6[%c0_10, %c0_11] : memref<1x8xf32, #tpu.memory_space<vmem>>, vector<1x8xf32>
    %10 = vector.broadcast %9 : vector<1x8xf32> to vector<2x8xf32>
    %11 = arith.addf %8, %10 : vector<2x8xf32>
    %12 = vector.extract_strided_slice %11 {offsets = [0, 0], sizes = [2, 4], strides = [1, 1]} : vector<2x8xf32> to vector<2x4xf32>
    %13 = vector.extract_strided_slice %11 {offsets = [0, 4], sizes = [2, 4], strides = [1, 1]} : vector<2x8xf32> to vector<2x4xf32>
    %cst_12 = arith.constant dense<0xFF800000> : vector<2xf32>
    %14 = vector.multi_reduction <maximumf>, %12, %cst_12 [1] : vector<2x4xf32> to vector<2xf32>
    %15 = vector.shape_cast %14 : vector<2xf32> to vector<2x1xf32>
    %cst_13 = arith.constant dense<0x7F800000> : vector<2xf32>
    %16 = vector.multi_reduction <minimumf>, %12, %cst_13 [1] : vector<2x4xf32> to vector<2xf32>
    %17 = vector.shape_cast %16 : vector<2xf32> to vector<2x1xf32>
    %cst_14 = arith.constant 0.000000e+00 : f32
    %18 = vector.broadcast %cst_14 : f32 to vector<2x4xf32>
    %19 = arith.cmpf oge, %13, %18 : vector<2x4xf32>
    %20 = vector.broadcast %15 : vector<2x1xf32> to vector<2x4xf32>
    %21 = arith.mulf %13, %20 : vector<2x4xf32>
    %22 = vector.broadcast %17 : vector<2x1xf32> to vector<2x4xf32>
    %23 = arith.mulf %13, %22 : vector<2x4xf32>
    %24 = arith.select %19, %21, %23 : vector<2x4xi1>, vector<2x4xf32>
    %25 = vector.shape_cast %13 : vector<2x4xf32> to vector<2x4x1xf32>
    %26 = vector.shape_cast %12 : vector<2x4xf32> to vector<2x1x4xf32>
    %27 = vector.broadcast %25 : vector<2x4x1xf32> to vector<2x4x4xf32>
    %28 = vector.broadcast %26 : vector<2x1x4xf32> to vector<2x4x4xf32>
    %29 = arith.mulf %27, %28 : vector<2x4x4xf32>
    %30 = vector.shape_cast %24 : vector<2x4xf32> to vector<2x4x1xf32>
    %31 = vector.broadcast %30 : vector<2x4x1xf32> to vector<2x4x4xf32>
    %32 = arith.subf %29, %31 : vector<2x4x4xf32>
    %33 = math.exp %32 : vector<2x4x4xf32>
    %34 = vector.shape_cast %6 : vector<2x4xf32> to vector<2x1x4xf32>
    %35 = vector.broadcast %34 : vector<2x1x4xf32> to vector<2x4x4xf32>
    %36 = arith.mulf %33, %35 : vector<2x4x4xf32>
    %cst_15 = arith.constant dense<0.000000e+00> : vector<2x4xf32>
    %37 = vector.multi_reduction <add>, %36, %cst_15 [2] : vector<2x4x4xf32> to vector<2x4xf32>
    %cst_16 = arith.constant dense<0.000000e+00> : vector<2x4xf32>
    %38 = vector.multi_reduction <add>, %33, %cst_16 [2] : vector<2x4x4xf32> to vector<2x4xf32>
    %39 = arith.divf %37, %38 : vector<2x4xf32>
    %c0_17 = arith.constant 0 : index
    %c0_18 = arith.constant 0 : index
    %40 = vector.load %arg7[%c0_17, %c0_18] : memref<4x32xf32, #tpu.memory_space<vmem>>, vector<4x32xf32>
    %cst_19 = arith.constant dense<0.000000e+00> : vector<2x32xf32>
    %41 = tpu.matmul %39, %40, %cst_19 {dimension_numbers = #tpu.dot_dimension_numbers<[1], [0], [0], [1], [0, 0, 1, 1], [], []>, precision = #tpu.contract_precision<fp32>} : vector<2x4xf32>, vector<4x32xf32>, vector<2x32xf32> -> vector<2x32xf32>
    %c0_20 = arith.constant 0 : index
    %c0_21 = arith.constant 0 : index
    %42 = vector.load %arg8[%c0_20, %c0_21] : memref<1x32xf32, #tpu.memory_space<vmem>>, vector<1x32xf32>
    %43 = vector.broadcast %42 : vector<1x32xf32> to vector<2x32xf32>
    %44 = arith.addf %41, %43 : vector<2x32xf32>
    %45 = arith.addf %44, %0 : vector<2x32xf32>
    %c0_22 = arith.constant 0 : index
    %c0_23 = arith.constant 0 : index
    %46 = vector.load %arg9[%c0_22, %c0_23] : memref<2x32xf32, #tpu.memory_space<vmem>>, vector<2x32xf32>
    tpu.vector_store %arg9[%c0_22, %c0_23], %45 {strides = array<i32>} : memref<2x32xf32, #tpu.memory_space<vmem>>, vector<2x32xf32>,
    return
  }
  func.func @transform_0(%arg0: i32) -> (i32, i32) {
    %c0_i32 = arith.constant 0 : i32
    %c0_i32_0 = arith.constant 0 : i32
    return %arg0, %c0_i32 : i32, i32
  }
  func.func @transform_1(%arg0: i32) -> (i32, i32) {
    %c0_i32 = arith.constant 0 : i32
    %c0_i32_0 = arith.constant 0 : i32
    return %arg0, %c0_i32 : i32, i32
  }
  func.func @transform_2(%arg0: i32) -> (i32, i32) {
    %c0_i32 = arith.constant 0 : i32
    %c0_i32_0 = arith.constant 0 : i32
    %c0_i32_1 = arith.constant 0 : i32
    return %c0_i32, %c0_i32_0 : i32, i32
  }
  func.func @transform_3(%arg0: i32) -> (i32, i32) {
    %c0_i32 = arith.constant 0 : i32
    %c0_i32_0 = arith.constant 0 : i32
    %c0_i32_1 = arith.constant 0 : i32
    return %c0_i32, %c0_i32_0 : i32, i32
  }
  func.func @transform_4(%arg0: i32) -> (i32, i32) {
    %c0_i32 = arith.constant 0 : i32
    %c0_i32_0 = arith.constant 0 : i32
    %c0_i32_1 = arith.constant 0 : i32
    return %c0_i32, %c0_i32_0 : i32, i32
  }
  func.func @transform_5(%arg0: i32) -> (i32, i32) {
    %c0_i32 = arith.constant 0 : i32
    %c0_i32_0 = arith.constant 0 : i32
    %c0_i32_1 = arith.constant 0 : i32
    return %c0_i32, %c0_i32_0 : i32, i32
  }
  func.func @transform_6(%arg0: i32) -> (i32, i32) {
    %c0_i32 = arith.constant 0 : i32
    %c0_i32_0 = arith.constant 0 : i32
    %c0_i32_1 = arith.constant 0 : i32
    return %c0_i32, %c0_i32_0 : i32, i32
  }
  func.func @transform_7(%arg0: i32) -> (i32, i32) {
    %c0_i32 = arith.constant 0 : i32
    %c0_i32_0 = arith.constant 0 : i32
    %c0_i32_1 = arith.constant 0 : i32
    return %c0_i32, %c0_i32_0 : i32, i32
  }
  func.func @transform_8(%arg0: i32) -> (i32, i32) {
    %c0_i32 = arith.constant 0 : i32
    %c0_i32_0 = arith.constant 0 : i32
    return %arg0, %c0_i32 : i32, i32
  }
}

</mosaic_0001>

<llo_original>
// kernel: cross_attention_block.1
$region0: #{cross_attention_block.1}
  #allocation0 [shape = 'u32[]', space=smem, size = 0x4, offset = 0x4, fixed_abs, tag = 'smem constant byte address 0x4 - core index']
  #allocation1 [shape = 'u32[144,128]{1,0:T(1,128)}', space=vmem, size = 0x12000, scoped, tag = 'internal scratch']
  %s0 = inlined_call_operand.vmem [shape: f32[2,32], index: 0, kind: input, shape index: {}]
  %s1 = inlined_call_operand.vmem [shape: f32[2,32], index: 1, kind: input, shape index: {}]
  %s2 = inlined_call_operand.vmem [shape: f32[32,4], index: 2, kind: input, shape index: {}]
  %s3 = inlined_call_operand.vmem [shape: f32[1,4], index: 3, kind: input, shape index: {}]
  %s4 = inlined_call_operand.vmem [shape: f32[32,8], index: 4, kind: input, shape index: {}]
  %s5 = inlined_call_operand.vmem [shape: f32[1,8], index: 5, kind: input, shape index: {}]
  %s6 = inlined_call_operand.vmem [shape: f32[4,32], index: 6, kind: input, shape index: {}]
  %s7 = inlined_call_operand.vmem [shape: f32[1,32], index: 7, kind: input, shape index: {}]
  %s8 = inlined_call_operand.hbm [shape: f32[2,32], index: 8, kind: output, shape index: {}]
  %s9 = sld [smem:[#allocation0]]
  $region42: #{cross_attention_block.1} parent=0
    _
  %s11 = ssub.s32 1, %s9
  %s12 = scalar_select 0, %s11, %s9
  $region1: #{cross_attention_block.1} parent=0
    #allocation2 [shape = 'u8[1024]{0}', space=vmem, size = 0x400, scoped, tag = 'output window, operand 0, single buffered']
    #allocation3 [shape = 's32[1]{0}', space=sflag, size = 0x4, scoped, tag = 'scoped memory for cross_attention_block.1']
    %13 = vsyncpa [#allocation3], 0
    // Predicated region
    $region2: #{cross_attention_block.1} parent=1 // pred_check
      _
    $region3: #{cross_attention_block.1} parent=1 // pred_check_branch
      %15 = sbr.rel (0) target = $region5
    $region4: #{cross_attention_block.1} parent=1 // pred_region
      _
    $region5: #{cross_attention_block.1} parent=1 // pred_fallthru
      _
    // Predicated region
    $region6: #{cross_attention_block.1} parent=1 // pred_check
      _
    $region7: #{cross_attention_block.1} parent=1 // pred_check_branch
      %17 = sbr.rel (0) target = $region9
    $region8: #{cross_attention_block.1} parent=1 // pred_region
      _
    $region9: #{cross_attention_block.1} parent=1 // pred_fallthru
      _
    // Predicated region
    $region10: #{cross_attention_block.1} parent=1 // pred_check
      _
    $region11: #{cross_attention_block.1} parent=1 // pred_check_branch
      %19 = sbr.rel (0) target = $region13
    $region12: #{cross_attention_block.1} parent=1 // pred_region
      _
    $region13: #{cross_attention_block.1} parent=1 // pred_fallthru
      _
    // Predicated region
    $region14: #{cross_attention_block.1} parent=1 // pred_check
      _
    $region15: #{cross_attention_block.1} parent=1 // pred_check_branch
      %21 = sbr.rel (0) target = $region17
    $region16: #{cross_attention_block.1} parent=1 // pred_region
      _
    $region17: #{cross_attention_block.1} parent=1 // pred_fallthru
      _
    // Predicated region
    $region18: #{cross_attention_block.1} parent=1 // pred_check
      _
    $region19: #{cross_attention_block.1} parent=1 // pred_check_branch
      %23 = sbr.rel (0) target = $region21
    $region20: #{cross_attention_block.1} parent=1 // pred_region
      _
    $region21: #{cross_attention_block.1} parent=1 // pred_fallthru
      _
    // Predicated region
    $region22: #{cross_attention_block.1} parent=1 // pred_check
      _
    $region23: #{cross_attention_block.1} parent=1 // pred_check_branch
      %25 = sbr.rel (0) target = $region25
    $region24: #{cross_attention_block.1} parent=1 // pred_region
      _
    $region25: #{cross_attention_block.1} parent=1 // pred_fallthru
      _
    // Predicated region
    $region26: #{cross_attention_block.1} parent=1 // pred_check
      _
    $region27: #{cross_attention_block.1} parent=1 // pred_check_branch
      %27 = sbr.rel (0) target = $region29
    $region28: #{cross_attention_block.1} parent=1 // pred_region
      _
    $region29: #{cross_attention_block.1} parent=1 // pred_fallthru
      _
    // Predicated region
    $region30: #{cross_attention_block.1} parent=1 // pred_check
      _
    $region31: #{cross_attention_block.1} parent=1 // pred_check_branch
      %29 = sbr.rel (0) target = $region33
    $region32: #{cross_attention_block.1} parent=1 // pred_region
      _
    $region33: #{cross_attention_block.1} parent=1 // pred_fallthru
      _
    %v30 = vld [vmem:[%s0] sm:$0x3]
    %v31 = vld [vmem:[%s1] sm:$0x3]
    %v32 = vld [vmem:[%s2] sm:$0xff]
    %v33 = vld [vmem:[%s2 + $0x8] sm:$0xff]
    %v34 = vld [vmem:[%s2 + $0x10] sm:$0xff]
    %v35 = vld [vmem:[%s2 + $0x18] sm:$0xff]
    %v36 = vld [vmem:[%s3] sm:$0x1]
    %v38 = vlaneseq
    %v39 = vshrl.u32 %v38, 7
    %v40 = vsub.s32 0, %v39
    %v41 = vrot.slane %v36, %v40
    %vm43 = vcmask 261120
    %v45 = vsel %vm43, %v30, 0
    %47 = vmatprep.subr.mxu0 0.0
    %v48 = vand.u32 %v32, 4294901760
    %49 = vmatpush1.msra.mxu0 %v48
    %50 = vmatprep.subr.mxu0 0.0
    %v51 = vand.u32 %v33, 4294901760
    %52 = vmatpush1.msra.mxu0 %v51
    %53 = vmatprep.subr.mxu0 0.0
    %v54 = vand.u32 %v34, 4294901760
    %55 = vmatpush1.msra.mxu0 %v54
    %56 = vmatprep.subr.mxu0 0.0
    %v57 = vand.u32 %v35, 4294901760
    %58 = vmatpush1.msra.mxu0 %v57
    %59 = vmatprep.subr.mxu0 0.0
    %60 = vmatpush1.msra.mxu0 0.0
    %61 = vmatprep.subr.mxu0 0.0
    %62 = vmatpush1.msra.mxu0 0.0
    %63 = vmatprep.subr.mxu0 0.0
    %64 = vmatpush1.msra.mxu0 0.0
    %65 = vmatprep.subr.mxu0 0.0
    %66 = vmatpush1.msra.mxu0 0.0
    %67 = vmatprep.subr.mxu0 0.0
    %68 = vmatpush1.msra.mxu0 0.0
    %69 = vmatprep.subr.mxu0 0.0
    %70 = vmatpush1.msra.mxu0 0.0
    %71 = vmatprep.subr.mxu0 0.0
    %72 = vmatpush1.msra.mxu0 0.0
    %73 = vmatprep.subr.mxu0 0.0
    %74 = vmatpush1.msra.mxu0 0.0
    %75 = vmatprep.subr.mxu0 0.0
    %76 = vmatpush1.msra.mxu0 0.0
    %77 = vmatprep.subr.mxu0 0.0
    %78 = vmatpush1.msra.mxu0 0.0
    %79 = vmatprep.subr.mxu0 0.0
    %80 = vmatpush1.msra.mxu0 0.0
    %81 = vmatprep.subr.mxu0 0.0
    %82 = vmatpush1.msra.mxu0 0.0
    %83 = vmatprep.subr.mxu0 0.0
    %84 = vmatpush1.msra.mxu0 0.0
    %85 = vmatprep.subr.mxu0 0.0
    %86 = vmatpush1.msra.mxu0 0.0
    %87 = vmatprep.subr.mxu0 0.0
    %88 = vmatpush1.msra.mxu0 0.0
    %89 = vmatprep.subr.mxu0 0.0
    %90 = vmatpush1.msra.mxu0 0.0
    %91 = vmatprep.subr.mxu0 0.0
    %92 = vmatpush1.msra.mxu0 0.0
    %93 = vmatprep.subr.mxu0 0.0
    %94 = vmatpush1.msra.mxu0 0.0
    %95 = vmatprep.subr.mxu0 0.0
    %96 = vmatpush1.msra.mxu0 0.0
    %97 = vmatprep.subr.mxu0 0.0
    %98 = vmatpush1.msra.mxu0 0.0
    %99 = vmatprep.subr.mxu0 0.0
    %100 = vmatpush1.msra.mxu0 0.0
    %101 = vmatprep.subr.mxu0 0.0
    %102 = vmatpush1.msra.mxu0 0.0
    %103 = vmatprep.subr.mxu0 0.0
    %104 = vmatpush1.msra.mxu0 0.0
    %105 = vmatprep.subr.mxu0 0.0
    %106 = vmatpush1.msra.mxu0 0.0
    %107 = vmatprep.subr.mxu0 0.0
    %108 = vmatpush1.msra.mxu0 0.0
    %109 = vmatprep.subr.mxu0 0.0
    %110 = vmatpush1.msra.mxu0 0.0
    %111 = vmatprep.subr.mxu0 0.0
    %112 = vmatpush1.msra.mxu0 0.0
    %113 = vmatprep.subr.mxu0 0.0
    %114 = vmatpush1.msra.mxu0 0.0
    %115 = vmatprep.mubr.f32.mxu0 0.0
    %v116 = vand.u32 %v45, 4294901760
    %v117 = vsub.f32 %v45, %v116
    %v118 = vand.u32 %v117, 4294901760
    %v119 = vsub.f32 %v117, %v118
    %v120 = vand.u32 %v119, 4294901760
    %121 = vmatmul.mubr.f32.gmra.mrb[0].mxu0 %v120
    %v122 = vpop.f32.mrb[0].mxu0
    %v123 = vadd.f32 %v41, %v122
    %v124 = vpop.f32.mrb[0].mxu0
    %125 = vdwg.mxu0
    %126 = vmatprep.subr.mxu0 0.0
    %v127 = vand.u32 %v32, 4294901760
    %v128 = vsub.f32 %v32, %v127
    %v129 = vand.u32 %v128, 4294901760
    %v130 = vsub.f32 %v128, %v129
    %v131 = vand.u32 %v130, 4294901760
    %132 = vmatpush1.msra.mxu0 %v131
    %133 = vmatprep.subr.mxu0 0.0
    %v134 = vand.u32 %v33, 4294901760
    %v135 = vsub.f32 %v33, %v134
    %v136 = vand.u32 %v135, 4294901760
    %v137 = vsub.f32 %v135, %v136
    %v138 = vand.u32 %v137, 4294901760
    %139 = vmatpush1.msra.mxu0 %v138
    %140 = vmatprep.subr.mxu0 0.0
    %v141 = vand.u32 %v34, 4294901760
    %v142 = vsub.f32 %v34, %v141
    %v143 = vand.u32 %v142, 4294901760
    %v144 = vsub.f32 %v142, %v143
    %v145 = vand.u32 %v144, 4294901760
    %146 = vmatpush1.msra.mxu0 %v145
    %147 = vmatprep.subr.mxu0 0.0
    %v148 = vand.u32 %v35, 4294901760
    %v149 = vsub.f32 %v35, %v148
    %v150 = vand.u32 %v149, 4294901760
    %v151 = vsub.f32 %v149, %v150
    %v152 = vand.u32 %v151, 4294901760
    %153 = vmatpush1.msra.mxu0 %v152
    %154 = vmatprep.subr.mxu0 0.0
    %155 = vmatpush1.msra.mxu0 0.0
    %156 = vmatprep.subr.mxu0 0.0
    %157 = vmatpush1.msra.mxu0 0.0
    %158 = vmatprep.subr.mxu0 0.0
    %159 = vmatpush1.msra.mxu0 0.0
    %160 = vmatprep.subr.mxu0 0.0
    %161 = vmatpush1.msra.mxu0 0.0
    %162 = vmatprep.subr.mxu0 0.0
    %163 = vmatpush1.msra.mxu0 0.0
    %164 = vmatprep.subr.mxu0 0.0
    %165 = vmatpush1.msra.mxu0 0.0
    %166 = vmatprep.subr.mxu0 0.0
    %167 = vmatpush1.msra.mxu0 0.0
    %168 = vmatprep.subr.mxu0 0.0
    %169 = vmatpush1.msra.mxu0 0.0
    %170 = vmatprep.subr.mxu0 0.0
    %171 = vmatpush1.msra.mxu0 0.0
    %172 = vmatprep.subr.mxu0 0.0
    %173 = vmatpush1.msra.mxu0 0.0
    %174 = vmatprep.subr.mxu0 0.0
    %175 = vmatpush1.msra.mxu0 0.0
    %176 = vmatprep.subr.mxu0 0.0
    %177 = vmatpush1.msra.mxu0 0.0
    %178 = vmatprep.subr.mxu0 0.0
    %179 = vmatpush1.msra.mxu0 0.0
    %180 = vmatprep.subr.mxu0 0.0
    %181 = vmatpush1.msra.mxu0 0.0
    %182 = vmatprep.subr.mxu0 0.0
    %183 = vmatpush1.msra.mxu0 0.0
    %184 = vmatprep.subr.mxu0 0.0
    %185 = vmatpush1.msra.mxu0 0.0
    %186 = vmatprep.subr.mxu0 0.0
    %187 = vmatpush1.msra.mxu0 0.0
    %188 = vmatprep.subr.mxu0 0.0
    %189 = vmatpush1.msra.mxu0 0.0
    %190 = vmatprep.subr.mxu0 0.0
    %191 = vmatpush1.msra.mxu0 0.0
    %192 = vmatprep.subr.mxu0 0.0
    %193 = vmatpush1.msra.mxu0 0.0
    %194 = vmatprep.subr.mxu0 0.0
    %195 = vmatpush1.msra.mxu0 0.0
    %196 = vmatprep.subr.mxu0 0.0
    %197 = vmatpush1.msra.mxu0 0.0
    %198 = vmatprep.subr.mxu0 0.0
    %199 = vmatpush1.msra.mxu0 0.0
    %200 = vmatprep.subr.mxu0 0.0
    %201 = vmatpush1.msra.mxu0 0.0
    %202 = vmatprep.subr.mxu0 0.0
    %203 = vmatpush1.msra.mxu0 0.0
    %204 = vmatprep.subr.mxu0 0.0
    %205 = vmatpush1.msra.mxu0 0.0
    %206 = vmatprep.subr.mxu0 0.0
    %207 = vmatpush1.msra.mxu0 0.0
    %208 = vmatprep.subr.mxu0 0.0
    %209 = vmatpush1.msra.mxu0 0.0
    %210 = vmatprep.mubr.f32.mxu0 0.0
    %v211 = vand.u32 %v45, 4294901760
    %212 = vmatmul.mubr.f32.gmra.mrb[0].mxu0 %v211
    %v213 = vpop.f32.mrb[0].mxu0
    %v214 = vadd.f32 %v123, %v213
    %v215 = vpop.f32.mrb[0].mxu0
    %216 = vdwg.mxu0
    %217 = vmatprep.subr.mxu0 0.0
    %v218 = vand.u32 %v32, 4294901760
    %v219 = vsub.f32 %v32, %v218
    %220 = vmatpush1.msra.mxu0 %v219
    %221 = vmatprep.subr.mxu0 0.0
    %v222 = vand.u32 %v33, 4294901760
    %v223 = vsub.f32 %v33, %v222
    %224 = vmatpush1.msra.mxu0 %v223
    %225 = vmatprep.subr.mxu0 0.0
    %v226 = vand.u32 %v34, 4294901760
    %v227 = vsub.f32 %v34, %v226
    %228 = vmatpush1.msra.mxu0 %v227
    %229 = vmatprep.subr.mxu0 0.0
    %v230 = vand.u32 %v35, 4294901760
    %v231 = vsub.f32 %v35, %v230
    %232 = vmatpush1.msra.mxu0 %v231
    %233 = vmatprep.subr.mxu0 0.0
    %234 = vmatpush1.msra.mxu0 0.0
    %235 = vmatprep.subr.mxu0 0.0
    %236 = vmatpush1.msra.mxu0 0.0
    %237 = vmatprep.subr.mxu0 0.0
    %238 = vmatpush1.msra.mxu0 0.0
    %239 = vmatprep.subr.mxu0 0.0
    %240 = vmatpush1.msra.mxu0 0.0
    %241 = vmatprep.subr.mxu0 0.0
    %242 = vmatpush1.msra.mxu0 0.0
    %243 = vmatprep.subr.mxu0 0.0
    %244 = vmatpush1.msra.mxu0 0.0
    %245 = vmatprep.subr.mxu0 0.0
    %246 = vmatpush1.msra.mxu0 0.0
    %247 = vmatprep.subr.mxu0 0.0
    %248 = vmatpush1.msra.mxu0 0.0
    %249 = vmatprep.subr.mxu0 0.0
    %250 = vmatpush1.msra.mxu0 0.0
    %251 = vmatprep.subr.mxu0 0.0
    %252 = vmatpush1.msra.mxu0 0.0
    %253 = vmatprep.subr.mxu0 0.0
    %254 = vmatpush1.msra.mxu0 0.0
    %255 = vmatprep.subr.mxu0 0.0
    %256 = vmatpush1.msra.mxu0 0.0
    %257 = vmatprep.subr.mxu0 0.0
    %258 = vmatpush1.msra.mxu0 0.0
    %259 = vmatprep.subr.mxu0 0.0
    %260 = vmatpush1.msra.mxu0 0.0
    %261 = vmatprep.subr.mxu0 0.0
    %262 = vmatpush1.msra.mxu0 0.0
    %263 = vmatprep.subr.mxu0 0.0
    %264 = vmatpush1.msra.mxu0 0.0
    %265 = vmatprep.subr.mxu0 0.0
    %266 = vmatpush1.msra.mxu0 0.0
    %267 = vmatprep.subr.mxu0 0.0
    %268 = vmatpush1.msra.mxu0 0.0
    %269 = vmatprep.subr.mxu0 0.0
    %270 = vmatpush1.msra.mxu0 0.0
    %271 = vmatprep.subr.mxu0 0.0
    %272 = vmatpush1.msra.mxu0 0.0
    %273 = vmatprep.subr.mxu0 0.0
    %274 = vmatpush1.msra.mxu0 0.0
    %275 = vmatprep.subr.mxu0 0.0
    %276 = vmatpush1.msra.mxu0 0.0
    %277 = vmatprep.subr.mxu0 0.0
    %278 = vmatpush1.msra.mxu0 0.0
    %279 = vmatprep.subr.mxu0 0.0
    %280 = vmatpush1.msra.mxu0 0.0
    %281 = vmatprep.subr.mxu0 0.0
    %282 = vmatpush1.msra.mxu0 0.0
    %283 = vmatprep.subr.mxu0 0.0
    %284 = vmatpush1.msra.mxu0 0.0
    %285 = vmatprep.subr.mxu0 0.0
    %286 = vmatpush1.msra.mxu0 0.0
    %287 = vmatprep.subr.mxu0 0.0
    %288 = vmatpush1.msra.mxu0 0.0
    %289 = vmatprep.mubr.f32.mxu0 0.0
    %v290 = vand.u32 %v45, 4294901760
    %v291 = vsub.f32 %v45, %v290
    %292 = vmatmul.mubr.f32.gmra.mrb[0].mxu0 %v291
    %v293 = vpop.f32.mrb[0].mxu0
    %v294 = vadd.f32 %v214, %v293
    %v295 = vpop.f32.mrb[0].mxu0
    %296 = vdwg.mxu0
    %297 = vmatprep.subr.mxu0 0.0
    %v298 = vand.u32 %v32, 4294901760
    %299 = vmatpush1.msra.mxu0 %v298
    %300 = vmatprep.subr.mxu0 0.0
    %v301 = vand.u32 %v33, 4294901760
    %302 = vmatpush1.msra.mxu0 %v301
    %303 = vmatprep.subr.mxu0 0.0
    %v304 = vand.u32 %v34, 4294901760
    %305 = vmatpush1.msra.mxu0 %v304
    %306 = vmatprep.subr.mxu0 0.0
    %v307 = vand.u32 %v35, 4294901760
    %308 = vmatpush1.msra.mxu0 %v307
    %309 = vmatprep.subr.mxu0 0.0
    %310 = vmatpush1.msra.mxu0 0.0
    %311 = vmatprep.subr.mxu0 0.0
    %312 = vmatpush1.msra.mxu0 0.0
    %313 = vmatprep.subr.mxu0 0.0
    %314 = vmatpush1.msra.mxu0 0.0
    %315 = vmatprep.subr.mxu0 0.0
    %316 = vmatpush1.msra.mxu0 0.0
    %317 = vmatprep.subr.mxu0 0.0
    %318 = vmatpush1.msra.mxu0 0.0
    %319 = vmatprep.subr.mxu0 0.0
    %320 = vmatpush1.msra.mxu0 0.0
    %321 = vmatprep.subr.mxu0 0.0
    %322 = vmatpush1.msra.mxu0 0.0
    %323 = vmatprep.subr.mxu0 0.0
    %324 = vmatpush1.msra.mxu0 0.0
    %325 = vmatprep.subr.mxu0 0.0
    %326 = vmatpush1.msra.mxu0 0.0
    %327 = vmatprep.subr.mxu0 0.0
    %328 = vmatpush1.msra.mxu0 0.0
    %329 = vmatprep.subr.mxu0 0.0
    %330 = vmatpush1.msra.mxu0 0.0
    %331 = vmatprep.subr.mxu0 0.0
    %332 = vmatpush1.msra.mxu0 0.0
    %333 = vmatprep.subr.mxu0 0.0
    %334 = vmatpush1.msra.mxu0 0.0
    %335 = vmatprep.subr.mxu0 0.0
    %336 = vmatpush1.msra.mxu0 0.0
    %337 = vmatprep.subr.mxu0 0.0
    %338 = vmatpush1.msra.mxu0 0.0
    %339 = vmatprep.subr.mxu0 0.0
    %340 = vmatpush1.msra.mxu0 0.0
    %341 = vmatprep.subr.mxu0 0.0
    %342 = vmatpush1.msra.mxu0 0.0
    %343 = vmatprep.subr.mxu0 0.0
    %344 = vmatpush1.msra.mxu0 0.0
    %345 = vmatprep.subr.mxu0 0.0
    %346 = vmatpush1.msra.mxu0 0.0
    %347 = vmatprep.subr.mxu0 0.0
    %348 = vmatpush1.msra.mxu0 0.0
    %349 = vmatprep.subr.mxu0 0.0
    %350 = vmatpush1.msra.mxu0 0.0
    %351 = vmatprep.subr.mxu0 0.0
    %352 = vmatpush1.msra.mxu0 0.0
    %353 = vmatprep.subr.mxu0 0.0
    %354 = vmatpush1.msra.mxu0 0.0
    %355 = vmatprep.subr.mxu0 0.0
    %356 = vmatpush1.msra.mxu0 0.0
    %357 = vmatprep.subr.mxu0 0.0
    %358 = vmatpush1.msra.mxu0 0.0
    %359 = vmatprep.subr.mxu0 0.0
    %360 = vmatpush1.msra.mxu0 0.0
    %361 = vmatprep.subr.mxu0 0.0
    %362 = vmatpush1.msra.mxu0 0.0
    %363 = vmatprep.subr.mxu0 0.0
    %364 = vmatpush1.msra.mxu0 0.0
    %365 = vmatprep.mubr.f32.mxu0 0.0
    %v366 = vand.u32 %v45, 4294901760
    %v367 = vsub.f32 %v45, %v366
    %v368 = vand.u32 %v367, 4294901760
    %369 = vmatmul.mubr.f32.gmra.mrb[0].mxu0 %v368
    %v370 = vpop.f32.mrb[0].mxu0
    %v371 = vadd.f32 %v294, %v370
    %v372 = vpop.f32.mrb[0].mxu0
    %373 = vdwg.mxu0
    %374 = vmatprep.subr.mxu0 0.0
    %v375 = vand.u32 %v32, 4294901760
    %v376 = vsub.f32 %v32, %v375
    %v377 = vand.u32 %v376, 4294901760
    %378 = vmatpush1.msra.mxu0 %v377
    %379 = vmatprep.subr.mxu0 0.0
    %v380 = vand.u32 %v33, 4294901760
    %v381 = vsub.f32 %v33, %v380
    %v382 = vand.u32 %v381, 4294901760
    %383 = vmatpush1.msra.mxu0 %v382
    %384 = vmatprep.subr.mxu0 0.0
    %v385 = vand.u32 %v34, 4294901760
    %v386 = vsub.f32 %v34, %v385
    %v387 = vand.u32 %v386, 4294901760
    %388 = vmatpush1.msra.mxu0 %v387
    %389 = vmatprep.subr.mxu0 0.0
    %v390 = vand.u32 %v35, 4294901760
    %v391 = vsub.f32 %v35, %v390
    %v392 = vand.u32 %v391, 4294901760
    %393 = vmatpush1.msra.mxu0 %v392
    %394 = vmatprep.subr.mxu0 0.0
    %395 = vmatpush1.msra.mxu0 0.0
    %396 = vmatprep.subr.mxu0 0.0
    %397 = vmatpush1.msra.mxu0 0.0
    %398 = vmatprep.subr.mxu0 0.0
    %399 = vmatpush1.msra.mxu0 0.0
    %400 = vmatprep.subr.mxu0 0.0
    %401 = vmatpush1.msra.mxu0 0.0
    %402 = vmatprep.subr.mxu0 0.0
    %403 = vmatpush1.msra.mxu0 0.0
    %404 = vmatprep.subr.mxu0 0.0
    %405 = vmatpush1.msra.mxu0 0.0
    %406 = vmatprep.subr.mxu0 0.0
    %407 = vmatpush1.msra.mxu0 0.0
    %408 = vmatprep.subr.mxu0 0.0
    %409 = vmatpush1.msra.mxu0 0.0
    %410 = vmatprep.subr.mxu0 0.0
    %411 = vmatpush1.msra.mxu0 0.0
    %412 = vmatprep.subr.mxu0 0.0
    %413 = vmatpush1.msra.mxu0 0.0
    %414 = vmatprep.subr.mxu0 0.0
    %415 = vmatpush1.msra.mxu0 0.0
    %416 = vmatprep.subr.mxu0 0.0
    %417 = vmatpush1.msra.mxu0 0.0
    %418 = vmatprep.subr.mxu0 0.0
    %419 = vmatpush1.msra.mxu0 0.0
    %420 = vmatprep.subr.mxu0 0.0
    %421 = vmatpush1.msra.mxu0 0.0
    %422 = vmatprep.subr.mxu0 0.0
    %423 = vmatpush1.msra.mxu0 0.0
    %424 = vmatprep.subr.mxu0 0.0
    %425 = vmatpush1.msra.mxu0 0.0
    %426 = vmatprep.subr.mxu0 0.0
    %427 = vmatpush1.msra.mxu0 0.0
    %428 = vmatprep.subr.mxu0 0.0
    %429 = vmatpush1.msra.mxu0 0.0
    %430 = vmatprep.subr.mxu0 0.0
    %431 = vmatpush1.msra.mxu0 0.0
    %432 = vmatprep.subr.mxu0 0.0
    %433 = vmatpush1.msra.mxu0 0.0
    %434 = vmatprep.subr.mxu0 0.0
    %435 = vmatpush1.msra.mxu0 0.0
    %436 = vmatprep.subr.mxu0 0.0
    %437 = vmatpush1.msra.mxu0 0.0
    %438 = vmatprep.subr.mxu0 0.0
    %439 = vmatpush1.msra.mxu0 0.0
    %440 = vmatprep.subr.mxu0 0.0
    %441 = vmatpush1.msra.mxu0 0.0
    %442 = vmatprep.subr.mxu0 0.0
    %443 = vmatpush1.msra.mxu0 0.0
    %444 = vmatprep.subr.mxu0 0.0
    %445 = vmatpush1.msra.mxu0 0.0
    %446 = vmatprep.subr.mxu0 0.0
    %447 = vmatpush1.msra.mxu0 0.0
    %448 = vmatprep.subr.mxu0 0.0
    %449 = vmatpush1.msra.mxu0 0.0
    %450 = vmatprep.mubr.f32.mxu0 0.0
    %v451 = vand.u32 %v45, 4294901760
    %452 = vmatmul.mubr.f32.gmra.mrb[0].mxu0 %v451
    %v453 = vpop.f32.mrb[0].mxu0
    %v454 = vadd.f32 %v371, %v453
    %v455 = vpop.f32.mrb[0].mxu0
    %456 = vdwg.mxu0
    %457 = vmatprep.subr.mxu0 0.0
    %v458 = vand.u32 %v32, 4294901760
    %459 = vmatpush1.msra.mxu0 %v458
    %460 = vmatprep.subr.mxu0 0.0
    %v461 = vand.u32 %v33, 4294901760
    %462 = vmatpush1.msra.mxu0 %v461
    %463 = vmatprep.subr.mxu0 0.0
    %v464 = vand.u32 %v34, 4294901760
    %465 = vmatpush1.msra.mxu0 %v464
    %466 = vmatprep.subr.mxu0 0.0
    %v467 = vand.u32 %v35, 4294901760
    %468 = vmatpush1.msra.mxu0 %v467
    %469 = vmatprep.subr.mxu0 0.0
    %470 = vmatpush1.msra.mxu0 0.0
    %471 = vmatprep.subr.mxu0 0.0
    %472 = vmatpush1.msra.mxu0 0.0
    %473 = vmatprep.subr.mxu0 0.0
    %474 = vmatpush1.msra.mxu0 0.0
    %475 = vmatprep.subr.mxu0 0.0
    %476 = vmatpush1.msra.mxu0 0.0
    %477 = vmatprep.subr.mxu0 0.0
    %478 = vmatpush1.msra.mxu0 0.0
    %479 = vmatprep.subr.mxu0 0.0
    %480 = vmatpush1.msra.mxu0 0.0
    %481 = vmatprep.subr.mxu0 0.0
    %482 = vmatpush1.msra.mxu0 0.0
    %483 = vmatprep.subr.mxu0 0.0
    %484 = vmatpush1.msra.mxu0 0.0
    %485 = vmatprep.subr.mxu0 0.0
    %486 = vmatpush1.msra.mxu0 0.0
    %487 = vmatprep.subr.mxu0 0.0
    %488 = vmatpush1.msra.mxu0 0.0
    %489 = vmatprep.subr.mxu0 0.0
    %490 = vmatpush1.msra.mxu0 0.0
    %491 = vmatprep.subr.mxu0 0.0
    %492 = vmatpush1.msra.mxu0 0.0
    %493 = vmatprep.subr.mxu0 0.0
    %494 = vmatpush1.msra.mxu0 0.0
    %495 = vmatprep.subr.mxu0 0.0
    %496 = vmatpush1.msra.mxu0 0.0
    %497 = vmatprep.subr.mxu0 0.0
    %498 = vmatpush1.msra.mxu0 0.0
    %499 = vmatprep.subr.mxu0 0.0
    %500 = vmatpush1.msra.mxu0 0.0
    %501 = vmatprep.subr.mxu0 0.0
    %502 = vmatpush1.msra.mxu0 0.0
    %503 = vmatprep.subr.mxu0 0.0
    %504 = vmatpush1.msra.mxu0 0.0
    %505 = vmatprep.subr.mxu0 0.0
    %506 = vmatpush1.msra.mxu0 0.0
    %507 = vmatprep.subr.mxu0 0.0
    %508 = vmatpush1.msra.mxu0 0.0
    %509 = vmatprep.subr.mxu0 0.0
    %510 = vmatpush1.msra.mxu0 0.0
    %511 = vmatprep.subr.mxu0 0.0
    %512 = vmatpush1.msra.mxu0 0.0
    %513 = vmatprep.subr.mxu0 0.0
    %514 = vmatpush1.msra.mxu0 0.0
    %515 = vmatprep.subr.mxu0 0.0
    %516 = vmatpush1.msra.mxu0 0.0
    %517 = vmatprep.subr.mxu0 0.0
    %518 = vmatpush1.msra.mxu0 0.0
    %519 = vmatprep.subr.mxu0 0.0
    %520 = vmatpush1.msra.mxu0 0.0
    %521 = vmatprep.subr.mxu0 0.0
    %522 = vmatpush1.msra.mxu0 0.0
    %523 = vmatprep.subr.mxu0 0.0
    %524 = vmatpush1.msra.mxu0 0.0
    %525 = vmatprep.mubr.f32.mxu0 0.0
    %v526 = vand.u32 %v45, 4294901760
    %527 = vmatmul.mubr.f32.gmra.mrb[0].mxu0 %v526
    %v528 = vpop.f32.mrb[0].mxu0
    %v529 = vadd.f32 %v454, %v528
    %v530 = vpop.f32.mrb[0].mxu0
    %531 = vdwg.mxu0
    %v532 = vld [vmem:[%s4] sm:$0xff]
    %v533 = vld [vmem:[%s4 + $0x8] sm:$0xff]
    %v534 = vld [vmem:[%s4 + $0x10] sm:$0xff]
    %v535 = vld [vmem:[%s4 + $0x18] sm:$0xff]
    %v536 = vld [vmem:[%s5] sm:$0x1]
    %v538 = vlaneseq
    %v539 = vshrl.u32 %v538, 7
    %v540 = vsub.s32 0, %v539
    %v541 = vrot.slane %v536, %v540
    %v544 = vsel %vm43, %v31, 0
    %546 = vmatprep.subr.mxu0 0.0
    %v547 = vand.u32 %v532, 4294901760
    %548 = vmatpush1.msra.mxu0 %v547
    %549 = vmatprep.subr.mxu0 0.0
    %v550 = vand.u32 %v533, 4294901760
    %551 = vmatpush1.msra.mxu0 %v550
    %552 = vmatprep.subr.mxu0 0.0
    %v553 = vand.u32 %v534, 4294901760
    %554 = vmatpush1.msra.mxu0 %v553
    %555 = vmatprep.subr.mxu0 0.0
    %v556 = vand.u32 %v535, 4294901760
    %557 = vmatpush1.msra.mxu0 %v556
    %558 = vmatprep.subr.mxu0 0.0
    %559 = vmatpush1.msra.mxu0 0.0
    %560 = vmatprep.subr.mxu0 0.0
    %561 = vmatpush1.msra.mxu0 0.0
    %562 = vmatprep.subr.mxu0 0.0
    %563 = vmatpush1.msra.mxu0 0.0
    %564 = vmatprep.subr.mxu0 0.0
    %565 = vmatpush1.msra.mxu0 0.0
    %566 = vmatprep.subr.mxu0 0.0
    %567 = vmatpush1.msra.mxu0 0.0
    %568 = vmatprep.subr.mxu0 0.0
    %569 = vmatpush1.msra.mxu0 0.0
    %570 = vmatprep.subr.mxu0 0.0
    %571 = vmatpush1.msra.mxu0 0.0
    %572 = vmatprep.subr.mxu0 0.0
    %573 = vmatpush1.msra.mxu0 0.0
    %574 = vmatprep.subr.mxu0 0.0
    %575 = vmatpush1.msra.mxu0 0.0
    %576 = vmatprep.subr.mxu0 0.0
    %577 = vmatpush1.msra.mxu0 0.0
    %578 = vmatprep.subr.mxu0 0.0
    %579 = vmatpush1.msra.mxu0 0.0
    %580 = vmatprep.subr.mxu0 0.0
    %581 = vmatpush1.msra.mxu0 0.0
    %582 = vmatprep.subr.mxu0 0.0
    %583 = vmatpush1.msra.mxu0 0.0
    %584 = vmatprep.subr.mxu0 0.0
    %585 = vmatpush1.msra.mxu0 0.0
    %586 = vmatprep.subr.mxu0 0.0
    %587 = vmatpush1.msra.mxu0 0.0
    %588 = vmatprep.subr.mxu0 0.0
    %589 = vmatpush1.msra.mxu0 0.0
    %590 = vmatprep.subr.mxu0 0.0
    %591 = vmatpush1.msra.mxu0 0.0
    %592 = vmatprep.subr.mxu0 0.0
    %593 = vmatpush1.msra.mxu0 0.0
    %594 = vmatprep.subr.mxu0 0.0
    %595 = vmatpush1.msra.mxu0 0.0
    %596 = vmatprep.subr.mxu0 0.0
    %597 = vmatpush1.msra.mxu0 0.0
    %598 = vmatprep.subr.mxu0 0.0
    %599 = vmatpush1.msra.mxu0 0.0
    %600 = vmatprep.subr.mxu0 0.0
    %601 = vmatpush1.msra.mxu0 0.0
    %602 = vmatprep.subr.mxu0 0.0
    %603 = vmatpush1.msra.mxu0 0.0
    %604 = vmatprep.subr.mxu0 0.0
    %605 = vmatpush1.msra.mxu0 0.0
    %606 = vmatprep.subr.mxu0 0.0
    %607 = vmatpush1.msra.mxu0 0.0
    %608 = vmatprep.subr.mxu0 0.0
    %609 = vmatpush1.msra.mxu0 0.0
    %610 = vmatprep.subr.mxu0 0.0
    %611 = vmatpush1.msra.mxu0 0.0
    %612 = vmatprep.subr.mxu0 0.0
    %613 = vmatpush1.msra.mxu0 0.0
    %614 = vmatprep.mubr.f32.mxu0 0.0
    %v615 = vand.u32 %v544, 4294901760
    %v616 = vsub.f32 %v544, %v615
    %v617 = vand.u32 %v616, 4294901760
    %v618 = vsub.f32 %v616, %v617
    %v619 = vand.u32 %v618, 4294901760
    %620 = vmatmul.mubr.f32.gmra.mrb[0].mxu0 %v619
    %v621 = vpop.f32.mrb[0].mxu0
    %v622 = vadd.f32 %v541, %v621
    %v623 = vpop.f32.mrb[0].mxu0
    %624 = vdwg.mxu0
    %625 = vmatprep.subr.mxu0 0.0
    %v626 = vand.u32 %v532, 4294901760
    %v627 = vsub.f32 %v532, %v626
    %v628 = vand.u32 %v627, 4294901760
    %v629 = vsub.f32 %v627, %v628
    %v630 = vand.u32 %v629, 4294901760
    %631 = vmatpush1.msra.mxu0 %v630
    %632 = vmatprep.subr.mxu0 0.0
    %v633 = vand.u32 %v533, 4294901760
    %v634 = vsub.f32 %v533, %v633
    %v635 = vand.u32 %v634, 4294901760
    %v636 = vsub.f32 %v634, %v635
    %v637 = vand.u32 %v636, 4294901760
    %638 = vmatpush1.msra.mxu0 %v637
    %639 = vmatprep.subr.mxu0 0.0
    %v640 = vand.u32 %v534, 4294901760
    %v641 = vsub.f32 %v534, %v640
    %v642 = vand.u32 %v641, 4294901760
    %v643 = vsub.f32 %v641, %v642
    %v644 = vand.u32 %v643, 4294901760
    %645 = vmatpush1.msra.mxu0 %v644
    %646 = vmatprep.subr.mxu0 0.0
    %v647 = vand.u32 %v535, 4294901760
    %v648 = vsub.f32 %v535, %v647
    %v649 = vand.u32 %v648, 4294901760
    %v650 = vsub.f32 %v648, %v649
    %v651 = vand.u32 %v650, 4294901760
    %652 = vmatpush1.msra.mxu0 %v651
    %653 = vmatprep.subr.mxu0 0.0
    %654 = vmatpush1.msra.mxu0 0.0
    %655 = vmatprep.subr.mxu0 0.0
    %656 = vmatpush1.msra.mxu0 0.0
    %657 = vmatprep.subr.mxu0 0.0
    %658 = vmatpush1.msra.mxu0 0.0
    %659 = vmatprep.subr.mxu0 0.0
    %660 = vmatpush1.msra.mxu0 0.0
    %661 = vmatprep.subr.mxu0 0.0
    %662 = vmatpush1.msra.mxu0 0.0
    %663 = vmatprep.subr.mxu0 0.0
    %664 = vmatpush1.msra.mxu0 0.0
    %665 = vmatprep.subr.mxu0 0.0
    %666 = vmatpush1.msra.mxu0 0.0
    %667 = vmatprep.subr.mxu0 0.0
    %668 = vmatpush1.msra.mxu0 0.0
    %669 = vmatprep.subr.mxu0 0.0
    %670 = vmatpush1.msra.mxu0 0.0
    %671 = vmatprep.subr.mxu0 0.0
    %672 = vmatpush1.msra.mxu0 0.0
    %673 = vmatprep.subr.mxu0 0.0
    %674 = vmatpush1.msra.mxu0 0.0
    %675 = vmatprep.subr.mxu0 0.0
    %676 = vmatpush1.msra.mxu0 0.0
    %677 = vmatprep.subr.mxu0 0.0
    %678 = vmatpush1.msra.mxu0 0.0
    %679 = vmatprep.subr.mxu0 0.0
    %680 = vmatpush1.msra.mxu0 0.0
    %681 = vmatprep.subr.mxu0 0.0
    %682 = vmatpush1.msra.mxu0 0.0
    %683 = vmatprep.subr.mxu0 0.0
    %684 = vmatpush1.msra.mxu0 0.0
    %685 = vmatprep.subr.mxu0 0.0
    %686 = vmatpush1.msra.mxu0 0.0
    %687 = vmatprep.subr.mxu0 0.0
    %688 = vmatpush1.msra.mxu0 0.0
    %689 = vmatprep.subr.mxu0 0.0
    %690 = vmatpush1.msra.mxu0 0.0
    %691 = vmatprep.subr.mxu0 0.0
    %692 = vmatpush1.msra.mxu0 0.0
    %693 = vmatprep.subr.mxu0 0.0
    %694 = vmatpush1.msra.mxu0 0.0
    %695 = vmatprep.subr.mxu0 0.0
    %696 = vmatpush1.msra.mxu0 0.0
    %697 = vmatprep.subr.mxu0 0.0
    %698 = vmatpush1.msra.mxu0 0.0
    %699 = vmatprep.subr.mxu0 0.0
    %700 = vmatpush1.msra.mxu0 0.0
    %701 = vmatprep.subr.mxu0 0.0
    %702 = vmatpush1.msra.mxu0 0.0
    %703 = vmatprep.subr.mxu0 0.0
    %704 = vmatpush1.msra.mxu0 0.0
    %705 = vmatprep.subr.mxu0 0.0
    %706 = vmatpush1.msra.mxu0 0.0
    %707 = vmatprep.subr.mxu0 0.0
    %708 = vmatpush1.msra.mxu0 0.0
    %709 = vmatprep.mubr.f32.mxu0 0.0
    %v710 = vand.u32 %v544, 4294901760
    %711 = vmatmul.mubr.f32.gmra.mrb[0].mxu0 %v710
    %v712 = vpop.f32.mrb[0].mxu0
    %v713 = vadd.f32 %v622, %v712
    %v714 = vpop.f32.mrb[0].mxu0
    %715 = vdwg.mxu0
    %716 = vmatprep.subr.mxu0 0.0
    %v717 = vand.u32 %v532, 4294901760
    %v718 = vsub.f32 %v532, %v717
    %719 = vmatpush1.msra.mxu0 %v718
    %720 = vmatprep.subr.mxu0 0.0
    %v721 = vand.u32 %v533, 4294901760
    %v722 = vsub.f32 %v533, %v721
    %723 = vmatpush1.msra.mxu0 %v722
    %724 = vmatprep.subr.mxu0 0.0
    %v725 = vand.u32 %v534, 4294901760
    %v726 = vsub.f32 %v534, %v725
    %727 = vmatpush1.msra.mxu0 %v726
    %728 = vmatprep.subr.mxu0 0.0
    %v729 = vand.u32 %v535, 4294901760
    %v730 = vsub.f32 %v535, %v729
    %731 = vmatpush1.msra.mxu0 %v730
    %732 = vmatprep.subr.mxu0 0.0
    %733 = vmatpush1.msra.mxu0 0.0
    %734 = vmatprep.subr.mxu0 0.0
    %735 = vmatpush1.msra.mxu0 0.0
    %736 = vmatprep.subr.mxu0 0.0
    %737 = vmatpush1.msra.mxu0 0.0
    %738 = vmatprep.subr.mxu0 0.0
    %739 = vmatpush1.msra.mxu0 0.0
    %740 = vmatprep.subr.mxu0 0.0
    %741 = vmatpush1.msra.mxu0 0.0
    %742 = vmatprep.subr.mxu0 0.0
    %743 = vmatpush1.msra.mxu0 0.0
    %744 = vmatprep.subr.mxu0 0.0
    %745 = vmatpush1.msra.mxu0 0.0
    %746 = vmatprep.subr.mxu0 0.0
    %747 = vmatpush1.msra.mxu0 0.0
    %748 = vmatprep.subr.mxu0 0.0
    %749 = vmatpush1.msra.mxu0 0.0
    %750 = vmatprep.subr.mxu0 0.0
    %751 = vmatpush1.msra.mxu0 0.0
    %752 = vmatprep.subr.mxu0 0.0
    %753 = vmatpush1.msra.mxu0 0.0
    %754 = vmatprep.subr.mxu0 0.0
    %755 = vmatpush1.msra.mxu0 0.0
    %756 = vmatprep.subr.mxu0 0.0
    %757 = vmatpush1.msra.mxu0 0.0
    %758 = vmatprep.subr.mxu0 0.0
    %759 = vmatpush1.msra.mxu0 0.0
    %760 = vmatprep.subr.mxu0 0.0
    %761 = vmatpush1.msra.mxu0 0.0
    %762 = vmatprep.subr.mxu0 0.0
    %763 = vmatpush1.msra.mxu0 0.0
    %764 = vmatprep.subr.mxu0 0.0
    %765 = vmatpush1.msra.mxu0 0.0
    %766 = vmatprep.subr.mxu0 0.0
    %767 = vmatpush1.msra.mxu0 0.0
    %768 = vmatprep.subr.mxu0 0.0
    %769 = vmatpush1.msra.mxu0 0.0
    %770 = vmatprep.subr.mxu0 0.0
    %771 = vmatpush1.msra.mxu0 0.0
    %772 = vmatprep.subr.mxu0 0.0
    %773 = vmatpush1.msra.mxu0 0.0
    %774 = vmatprep.subr.mxu0 0.0
    %775 = vmatpush1.msra.mxu0 0.0
    %776 = vmatprep.subr.mxu0 0.0
    %777 = vmatpush1.msra.mxu0 0.0
    %778 = vmatprep.subr.mxu0 0.0
    %779 = vmatpush1.msra.mxu0 0.0
    %780 = vmatprep.subr.mxu0 0.0
    %781 = vmatpush1.msra.mxu0 0.0
    %782 = vmatprep.subr.mxu0 0.0
    %783 = vmatpush1.msra.mxu0 0.0
    %784 = vmatprep.subr.mxu0 0.0
    %785 = vmatpush1.msra.mxu0 0.0
    %786 = vmatprep.subr.mxu0 0.0
    %787 = vmatpush1.msra.mxu0 0.0
    %788 = vmatprep.mubr.f32.mxu0 0.0
    %v789 = vand.u32 %v544, 4294901760
    %v790 = vsub.f32 %v544, %v789
    %791 = vmatmul.mubr.f32.gmra.mrb[0].mxu0 %v790
    %v792 = vpop.f32.mrb[0].mxu0
    %v793 = vadd.f32 %v713, %v792
    %v794 = vpop.f32.mrb[0].mxu0
    %795 = vdwg.mxu0
    %796 = vmatprep.subr.mxu0 0.0
    %v797 = vand.u32 %v532, 4294901760
    %798 = vmatpush1.msra.mxu0 %v797
    %799 = vmatprep.subr.mxu0 0.0
    %v800 = vand.u32 %v533, 4294901760
    %801 = vmatpush1.msra.mxu0 %v800
    %802 = vmatprep.subr.mxu0 0.0
    %v803 = vand.u32 %v534, 4294901760
    %804 = vmatpush1.msra.mxu0 %v803
    %805 = vmatprep.subr.mxu0 0.0
    %v806 = vand.u32 %v535, 4294901760
    %807 = vmatpush1.msra.mxu0 %v806
    %808 = vmatprep.subr.mxu0 0.0
    %809 = vmatpush1.msra.mxu0 0.0
    %810 = vmatprep.subr.mxu0 0.0
    %811 = vmatpush1.msra.mxu0 0.0
    %812 = vmatprep.subr.mxu0 0.0
    %813 = vmatpush1.msra.mxu0 0.0
    %814 = vmatprep.subr.mxu0 0.0
    %815 = vmatpush1.msra.mxu0 0.0
    %816 = vmatprep.subr.mxu0 0.0
    %817 = vmatpush1.msra.mxu0 0.0
    %818 = vmatprep.subr.mxu0 0.0
    %819 = vmatpush1.msra.mxu0 0.0
    %820 = vmatprep.subr.mxu0 0.0
    %821 = vmatpush1.msra.mxu0 0.0
    %822 = vmatprep.subr.mxu0 0.0
    %823 = vmatpush1.msra.mxu0 0.0
    %824 = vmatprep.subr.mxu0 0.0
    %825 = vmatpush1.msra.mxu0 0.0
    %826 = vmatprep.subr.mxu0 0.0
    %827 = vmatpush1.msra.mxu0 0.0
    %828 = vmatprep.subr.mxu0 0.0
    %829 = vmatpush1.msra.mxu0 0.0
    %830 = vmatprep.subr.mxu0 0.0
    %831 = vmatpush1.msra.mxu0 0.0
    %832 = vmatprep.subr.mxu0 0.0
    %833 = vmatpush1.msra.mxu0 0.0
    %834 = vmatprep.subr.mxu0 0.0
    %835 = vmatpush1.msra.mxu0 0.0
    %836 = vmatprep.subr.mxu0 0.0
    %837 = vmatpush1.msra.mxu0 0.0
    %838 = vmatprep.subr.mxu0 0.0
    %839 = vmatpush1.msra.mxu0 0.0
    %840 = vmatprep.subr.mxu0 0.0
    %841 = vmatpush1.msra.mxu0 0.0
    %842 = vmatprep.subr.mxu0 0.0
    %843 = vmatpush1.msra.mxu0 0.0
    %844 = vmatprep.subr.mxu0 0.0
    %845 = vmatpush1.msra.mxu0 0.0
    %846 = vmatprep.subr.mxu0 0.0
    %847 = vmatpush1.msra.mxu0 0.0
    %848 = vmatprep.subr.mxu0 0.0
    %849 = vmatpush1.msra.mxu0 0.0
    %850 = vmatprep.subr.mxu0 0.0
    %851 = vmatpush1.msra.mxu0 0.0
    %852 = vmatprep.subr.mxu0 0.0
    %853 = vmatpush1.msra.mxu0 0.0
    %854 = vmatprep.subr.mxu0 0.0
    %855 = vmatpush1.msra.mxu0 0.0
    %856 = vmatprep.subr.mxu0 0.0
    %857 = vmatpush1.msra.mxu0 0.0
    %858 = vmatprep.subr.mxu0 0.0
    %859 = vmatpush1.msra.mxu0 0.0
    %860 = vmatprep.subr.mxu0 0.0
    %861 = vmatpush1.msra.mxu0 0.0
    %862 = vmatprep.subr.mxu0 0.0
    %863 = vmatpush1.msra.mxu0 0.0
    %864 = vmatprep.mubr.f32.mxu0 0.0
    %v865 = vand.u32 %v544, 4294901760
    %v866 = vsub.f32 %v544, %v865
    %v867 = vand.u32 %v866, 4294901760
    %868 = vmatmul.mubr.f32.gmra.mrb[0].mxu0 %v867
    %v869 = vpop.f32.mrb[0].mxu0
    %v870 = vadd.f32 %v793, %v869
    %v871 = vpop.f32.mrb[0].mxu0
    %872 = vdwg.mxu0
    %873 = vmatprep.subr.mxu0 0.0
    %v874 = vand.u32 %v532, 4294901760
    %v875 = vsub.f32 %v532, %v874
    %v876 = vand.u32 %v875, 4294901760
    %877 = vmatpush1.msra.mxu0 %v876
    %878 = vmatprep.subr.mxu0 0.0
    %v879 = vand.u32 %v533, 4294901760
    %v880 = vsub.f32 %v533, %v879
    %v881 = vand.u32 %v880, 4294901760
    %882 = vmatpush1.msra.mxu0 %v881
    %883 = vmatprep.subr.mxu0 0.0
    %v884 = vand.u32 %v534, 4294901760
    %v885 = vsub.f32 %v534, %v884
    %v886 = vand.u32 %v885, 4294901760
    %887 = vmatpush1.msra.mxu0 %v886
    %888 = vmatprep.subr.mxu0 0.0
    %v889 = vand.u32 %v535, 4294901760
    %v890 = vsub.f32 %v535, %v889
    %v891 = vand.u32 %v890, 4294901760
    %892 = vmatpush1.msra.mxu0 %v891
    %893 = vmatprep.subr.mxu0 0.0
    %894 = vmatpush1.msra.mxu0 0.0
    %895 = vmatprep.subr.mxu0 0.0
    %896 = vmatpush1.msra.mxu0 0.0
    %897 = vmatprep.subr.mxu0 0.0
    %898 = vmatpush1.msra.mxu0 0.0
    %899 = vmatprep.subr.mxu0 0.0
    %900 = vmatpush1.msra.mxu0 0.0
    %901 = vmatprep.subr.mxu0 0.0
    %902 = vmatpush1.msra.mxu0 0.0
    %903 = vmatprep.subr.mxu0 0.0
    %904 = vmatpush1.msra.mxu0 0.0
    %905 = vmatprep.subr.mxu0 0.0
    %906 = vmatpush1.msra.mxu0 0.0
    %907 = vmatprep.subr.mxu0 0.0
    %908 = vmatpush1.msra.mxu0 0.0
    %909 = vmatprep.subr.mxu0 0.0
    %910 = vmatpush1.msra.mxu0 0.0
    %911 = vmatprep.subr.mxu0 0.0
    %912 = vmatpush1.msra.mxu0 0.0
    %913 = vmatprep.subr.mxu0 0.0
    %914 = vmatpush1.msra.mxu0 0.0
    %915 = vmatprep.subr.mxu0 0.0
    %916 = vmatpush1.msra.mxu0 0.0
    %917 = vmatprep.subr.mxu0 0.0
    %918 = vmatpush1.msra.mxu0 0.0
    %919 = vmatprep.subr.mxu0 0.0
    %920 = vmatpush1.msra.mxu0 0.0
    %921 = vmatprep.subr.mxu0 0.0
    %922 = vmatpush1.msra.mxu0 0.0
    %923 = vmatprep.subr.mxu0 0.0
    %924 = vmatpush1.msra.mxu0 0.0
    %925 = vmatprep.subr.mxu0 0.0
    %926 = vmatpush1.msra.mxu0 0.0
    %927 = vmatprep.subr.mxu0 0.0
    %928 = vmatpush1.msra.mxu0 0.0
    %929 = vmatprep.subr.mxu0 0.0
    %930 = vmatpush1.msra.mxu0 0.0
    %931 = vmatprep.subr.mxu0 0.0
    %932 = vmatpush1.msra.mxu0 0.0
    %933 = vmatprep.subr.mxu0 0.0
    %934 = vmatpush1.msra.mxu0 0.0
    %935 = vmatprep.subr.mxu0 0.0
    %936 = vmatpush1.msra.mxu0 0.0
    %937 = vmatprep.subr.mxu0 0.0
    %938 = vmatpush1.msra.mxu0 0.0
    %939 = vmatprep.subr.mxu0 0.0
    %940 = vmatpush1.msra.mxu0 0.0
    %941 = vmatprep.subr.mxu0 0.0
    %942 = vmatpush1.msra.mxu0 0.0
    %943 = vmatprep.subr.mxu0 0.0
    %944 = vmatpush1.msra.mxu0 0.0
    %945 = vmatprep.subr.mxu0 0.0
    %946 = vmatpush1.msra.mxu0 0.0
    %947 = vmatprep.subr.mxu0 0.0
    %948 = vmatpush1.msra.mxu0 0.0
    %949 = vmatprep.mubr.f32.mxu0 0.0
    %v950 = vand.u32 %v544, 4294901760
    %951 = vmatmul.mubr.f32.gmra.mrb[0].mxu0 %v950
    %v952 = vpop.f32.mrb[0].mxu0
    %v953 = vadd.f32 %v870, %v952
    %v954 = vpop.f32.mrb[0].mxu0
    %955 = vdwg.mxu0
    %956 = vmatprep.subr.mxu0 0.0
    %v957 = vand.u32 %v532, 4294901760
    %958 = vmatpush1.msra.mxu0 %v957
    %959 = vmatprep.subr.mxu0 0.0
    %v960 = vand.u32 %v533, 4294901760
    %961 = vmatpush1.msra.mxu0 %v960
    %962 = vmatprep.subr.mxu0 0.0
    %v963 = vand.u32 %v534, 4294901760
    %964 = vmatpush1.msra.mxu0 %v963
    %965 = vmatprep.subr.mxu0 0.0
    %v966 = vand.u32 %v535, 4294901760
    %967 = vmatpush1.msra.mxu0 %v966
    %968 = vmatprep.subr.mxu0 0.0
    %969 = vmatpush1.msra.mxu0 0.0
    %970 = vmatprep.subr.mxu0 0.0
    %971 = vmatpush1.msra.mxu0 0.0
    %972 = vmatprep.subr.mxu0 0.0
    %973 = vmatpush1.msra.mxu0 0.0
    %974 = vmatprep.subr.mxu0 0.0
    %975 = vmatpush1.msra.mxu0 0.0
    %976 = vmatprep.subr.mxu0 0.0
    %977 = vmatpush1.msra.mxu0 0.0
    %978 = vmatprep.subr.mxu0 0.0
    %979 = vmatpush1.msra.mxu0 0.0
    %980 = vmatprep.subr.mxu0 0.0
    %981 = vmatpush1.msra.mxu0 0.0
    %982 = vmatprep.subr.mxu0 0.0
    %983 = vmatpush1.msra.mxu0 0.0
    %984 = vmatprep.subr.mxu0 0.0
    %985 = vmatpush1.msra.mxu0 0.0
    %986 = vmatprep.subr.mxu0 0.0
    %987 = vmatpush1.msra.mxu0 0.0
    %988 = vmatprep.subr.mxu0 0.0
    %989 = vmatpush1.msra.mxu0 0.0
    %990 = vmatprep.subr.mxu0 0.0
    %991 = vmatpush1.msra.mxu0 0.0
    %992 = vmatprep.subr.mxu0 0.0
    %993 = vmatpush1.msra.mxu0 0.0
    %994 = vmatprep.subr.mxu0 0.0
    %995 = vmatpush1.msra.mxu0 0.0
    %996 = vmatprep.subr.mxu0 0.0
    %997 = vmatpush1.msra.mxu0 0.0
    %998 = vmatprep.subr.mxu0 0.0
    %999 = vmatpush1.msra.mxu0 0.0
    %1000 = vmatprep.subr.mxu0 0.0
    %1001 = vmatpush1.msra.mxu0 0.0
    %1002 = vmatprep.subr.mxu0 0.0
    %1003 = vmatpush1.msra.mxu0 0.0
    %1004 = vmatprep.subr.mxu0 0.0
    %1005 = vmatpush1.msra.mxu0 0.0
    %1006 = vmatprep.subr.mxu0 0.0
    %1007 = vmatpush1.msra.mxu0 0.0
    %1008 = vmatprep.subr.mxu0 0.0
    %1009 = vmatpush1.msra.mxu0 0.0
    %1010 = vmatprep.subr.mxu0 0.0
    %1011 = vmatpush1.msra.mxu0 0.0
    %1012 = vmatprep.subr.mxu0 0.0
    %1013 = vmatpush1.msra.mxu0 0.0
    %1014 = vmatprep.subr.mxu0 0.0
    %1015 = vmatpush1.msra.mxu0 0.0
    %1016 = vmatprep.subr.mxu0 0.0
    %1017 = vmatpush1.msra.mxu0 0.0
    %1018 = vmatprep.subr.mxu0 0.0
    %1019 = vmatpush1.msra.mxu0 0.0
    %1020 = vmatprep.subr.mxu0 0.0
    %1021 = vmatpush1.msra.mxu0 0.0
    %1022 = vmatprep.subr.mxu0 0.0
    %1023 = vmatpush1.msra.mxu0 0.0
    %1024 = vmatprep.mubr.f32.mxu0 0.0
    %v1025 = vand.u32 %v544, 4294901760
    %1026 = vmatmul.mubr.f32.gmra.mrb[0].mxu0 %v1025
    %v1027 = vpop.f32.mrb[0].mxu0
    %v1028 = vadd.f32 %v953, %v1027
    %v1029 = vpop.f32.mrb[0].mxu0
    %1030 = vdwg.mxu0
    %vm1031 = vcmask 25600
    %v1032 = vsel %vm1031, %v1028, -inf
    %1033 = vmax.xlane.f32.xlu0 %v1032
    %v1034 = vpop.xlane.xlu0 %1033
    %v1035 = vsel %vm1031, %v1028, inf
    %1036 = vmin.xlane.f32.xlu0 %v1035
    %v1037 = vpop.xlane.xlu0 %1036
    %vm1038 = vcmp.ge.f32.partialorder %v1028, 0.0
    %v1039 = vmul.f32 %v1028, %v1034
    %v1040 = vmul.f32 %v1028, %v1037
    %v1041 = vsel %vm1038, %v1039, %v1040
    %v1042 = vlaneseq
    %v1043 = vshrl.u32 %v1042, 7
    %v1044 = vsub.s32 0, %v1043
    %v1045 = vrot.slane %v1028, %v1044
    %s1047 = sor.u32 256, 4
    %1048 = vbcast.lane.b32.xlu0 %v1045, %s1047
    %v1049 = vpop.permute.xlu0 %1048
    %v1050 = vlaneseq
    %v1051 = vshrl.u32 %v1050, 7
    %v1052 = vsub.s32 1, %v1051
    %v1053 = vrot.slane %v1028, %v1052
    %s1055 = sor.u32 256, 4
    %1056 = vbcast.lane.b32.xlu0 %v1053, %s1055
    %v1057 = vpop.permute.xlu0 %1056
    %v1060 = vunpack.c.l.s4 1966171168
    %v1061 = vunpack.c.0.s8 %v1060
    %v1062 = vlaneseq
    %v1063 = vshrl.u32 %v1062, 7
    %v1064 = vsub.s32 %v1061, %v1063
    %v1065 = vrot.slane %v1028, %v1064
    %v1066 = vcombine.high %v1065, %v1065
    %v1068 = vunpack.c.l.s4 1966171168
    %v1069 = vunpack.c.0.s8 %v1068
    %v1070 = vlaneseq
    %v1071 = vshrl.u32 %v1070, 7
    %v1072 = vsub.s32 %v1069, %v1071
    %v1073 = vrot.slane %v1065, %v1072
    %v1075 = vunpack.c.l.s4 1966171168
    %v1076 = vunpack.c.0.s8 %v1075
    %v1077 = vlaneseq
    %v1078 = vshrl.u32 %v1077, 7
    %v1079 = vsub.s32 %v1076, %v1078
    %v1080 = vrot.slane %v1066, %v1079
    %v1081 = vlaneseq
    %v1082 = vshrl.u32 %v1081, 7
    %v1083 = vsub.s32 0, %v1082
    %v1084 = vrot.slane %v1073, %v1083
    %v1085 = vlaneseq
    %v1086 = vshrl.u32 %v1085, 7
    %v1087 = vsub.s32 0, %v1086
    %v1088 = vrot.slane %v1080, %v1087
    %v1091 = vmul.f32 %v1049, %v1084
    %v1092 = vmul.f32 %v1057, %v1088
    %v1093 = vlaneseq
    %v1094 = vshrl.u32 %v1093, 7
    %v1095 = vsub.s32 0, %v1094
    %v1096 = vrot.slane %v1041, %v1095
    %s1098 = sor.u32 256, 4
    %1099 = vbcast.lane.b32.xlu0 %v1096, %s1098
    %v1100 = vpop.permute.xlu0 %1099
    %v1101 = vlaneseq
    %v1102 = vshrl.u32 %v1101, 7
    %v1103 = vsub.s32 1, %v1102
    %v1104 = vrot.slane %v1041, %v1103
    %s1106 = sor.u32 256, 4
    %1107 = vbcast.lane.b32.xlu0 %v1104, %s1106
    %v1108 = vpop.permute.xlu0 %1107
    %v1109 = vsub.f32 %v1091, %v1100
    %v1110 = vsub.f32 %v1092, %v1108
    %v1111 = vmul.f32 %v1109, 1.442695
    %v1112 = vpow.pop %v1111
    %v1113 = vmul.f32 %v1110, 1.442695
    %v1114 = vpow.pop %v1113
    %v1117 = vunpack.c.l.s4 1966171168
    %v1118 = vunpack.c.0.s8 %v1117
    %v1119 = vlaneseq
    %v1120 = vshrl.u32 %v1119, 7
    %v1121 = vsub.s32 %v1118, %v1120
    %v1122 = vrot.slane %v529, %v1121
    %v1123 = vcombine.high %v1122, %v1122
    %v1125 = vunpack.c.l.s4 1966171168
    %v1126 = vunpack.c.0.s8 %v1125
    %v1127 = vlaneseq
    %v1128 = vshrl.u32 %v1127, 7
    %v1129 = vsub.s32 %v1126, %v1128
    %v1130 = vrot.slane %v1122, %v1129
    %v1132 = vunpack.c.l.s4 1966171168
    %v1133 = vunpack.c.0.s8 %v1132
    %v1134 = vlaneseq
    %v1135 = vshrl.u32 %v1134, 7
    %v1136 = vsub.s32 %v1133, %v1135
    %v1137 = vrot.slane %v1123, %v1136
    %v1138 = vlaneseq
    %v1139 = vshrl.u32 %v1138, 7
    %v1140 = vsub.s32 0, %v1139
    %v1141 = vrot.slane %v1130, %v1140
    %v1142 = vlaneseq
    %v1143 = vshrl.u32 %v1142, 7
    %v1144 = vsub.s32 0, %v1143
    %v1145 = vrot.slane %v1137, %v1144
    %v1148 = vmul.f32 %v1112, %v1141
    %v1149 = vmul.f32 %v1114, %v1145
    %vm1150 = vcmask 27648
    %v1151 = vsel %vm1150, %v1148, 0.0
    %1152 = vadd.xlane.f32.xlu0 %v1151
    %v1153 = vpop.xlane.xlu0 %1152
    %v1154 = vsel %vm1150, %v1149, 0.0
    %1155 = vadd.xlane.f32.xlu0 %v1154
    %v1156 = vpop.xlane.xlu0 %1155
    %v1157 = vsel %vm1150, %v1112, 0.0
    %1158 = vadd.xlane.f32.xlu0 %v1157
    %v1159 = vpop.xlane.xlu0 %1158
    %v1160 = vsel %vm1150, %v1114, 0.0
    %1161 = vadd.xlane.f32.xlu0 %v1160
    %v1162 = vpop.xlane.xlu0 %1161
    %v1163 = vrcp.pop %v1159
    %v1164 = vmul.f32 %v1153, %v1163
    %v1165 = vrcp.pop %v1162
    %v1166 = vmul.f32 %v1156, %v1165
    %v1167 = vld [vmem:[%s6] sm:$0xf]
    %v1168 = vld [vmem:[%s7] sm:$0x1]
    %v1170 = vlaneseq
    %v1171 = vshrl.u32 %v1170, 7
    %v1172 = vsub.s32 0, %v1171
    %v1173 = vrot.slane %v1168, %v1172
    %v1177 = vlaneseq
    %v1178 = vand.u32 %v1177, 127
    %v1179 = vlaneseq
    %v1180 = vshrl.u32 %v1179, 7
    %v1181 = vsub.s32 %v1178, %v1180
    %v1182 = vrot.slane %v1164, %v1181
    %v1183 = vlaneseq
    %v1184 = vshrl.u32 %v1183, 7
    %v1185 = vsub.s32 %v1178, %v1184
    %v1186 = vrot.slane %v1166, %v1185
    %vm1187 = vcmask 1041409
    %v1188 = vsel %vm1187, %v1186, %v1182
    %vm1189 = vcmask 31744
    %v1190 = vsel %vm1189, %v1188, 0
    %vm1192 = vcmask 1043456
    %v1194 = vsel %vm1192, %v1167, 0
    %1196 = vmatprep.subr.mxu0 0.0
    %v1197 = vand.u32 %v1194, 4294901760
    %1198 = vmatpush1.msra.mxu0 %v1197
    %1199 = vmatprep.subr.mxu0 0.0
    %1200 = vmatpush1.msra.mxu0 0.0
    %1201 = vmatprep.subr.mxu0 0.0
    %1202 = vmatpush1.msra.mxu0 0.0
    %1203 = vmatprep.subr.mxu0 0.0
    %1204 = vmatpush1.msra.mxu0 0.0
    %1205 = vmatprep.subr.mxu0 0.0
    %1206 = vmatpush1.msra.mxu0 0.0
    %1207 = vmatprep.subr.mxu0 0.0
    %1208 = vmatpush1.msra.mxu0 0.0
    %1209 = vmatprep.subr.mxu0 0.0
    %1210 = vmatpush1.msra.mxu0 0.0
    %1211 = vmatprep.subr.mxu0 0.0
    %1212 = vmatpush1.msra.mxu0 0.0
    %1213 = vmatprep.subr.mxu0 0.0
    %1214 = vmatpush1.msra.mxu0 0.0
    %1215 = vmatprep.subr.mxu0 0.0
    %1216 = vmatpush1.msra.mxu0 0.0
    %1217 = vmatprep.subr.mxu0 0.0
    %1218 = vmatpush1.msra.mxu0 0.0
    %1219 = vmatprep.subr.mxu0 0.0
    %1220 = vmatpush1.msra.mxu0 0.0
    %1221 = vmatprep.subr.mxu0 0.0
    %1222 = vmatpush1.msra.mxu0 0.0
    %1223 = vmatprep.subr.mxu0 0.0
    %1224 = vmatpush1.msra.mxu0 0.0
    %1225 = vmatprep.subr.mxu0 0.0
    %1226 = vmatpush1.msra.mxu0 0.0
    %1227 = vmatprep.subr.mxu0 0.0
    %1228 = vmatpush1.msra.mxu0 0.0
    %1229 = vmatprep.subr.mxu0 0.0
    %1230 = vmatpush1.msra.mxu0 0.0
    %1231 = vmatprep.subr.mxu0 0.0
    %1232 = vmatpush1.msra.mxu0 0.0
    %1233 = vmatprep.subr.mxu0 0.0
    %1234 = vmatpush1.msra.mxu0 0.0
    %1235 = vmatprep.subr.mxu0 0.0
    %1236 = vmatpush1.msra.mxu0 0.0
    %1237 = vmatprep.subr.mxu0 0.0
    %1238 = vmatpush1.msra.mxu0 0.0
    %1239 = vmatprep.subr.mxu0 0.0
    %1240 = vmatpush1.msra.mxu0 0.0
    %1241 = vmatprep.subr.mxu0 0.0
    %1242 = vmatpush1.msra.mxu0 0.0
    %1243 = vmatprep.subr.mxu0 0.0
    %1244 = vmatpush1.msra.mxu0 0.0
    %1245 = vmatprep.subr.mxu0 0.0
    %1246 = vmatpush1.msra.mxu0 0.0
    %1247 = vmatprep.subr.mxu0 0.0
    %1248 = vmatpush1.msra.mxu0 0.0
    %1249 = vmatprep.subr.mxu0 0.0
    %1250 = vmatpush1.msra.mxu0 0.0
    %1251 = vmatprep.subr.mxu0 0.0
    %1252 = vmatpush1.msra.mxu0 0.0
    %1253 = vmatprep.subr.mxu0 0.0
    %1254 = vmatpush1.msra.mxu0 0.0
    %1255 = vmatprep.subr.mxu0 0.0
    %1256 = vmatpush1.msra.mxu0 0.0
    %1257 = vmatprep.subr.mxu0 0.0
    %1258 = vmatpush1.msra.mxu0 0.0
    %1259 = vmatprep.subr.mxu0 0.0
    %1260 = vmatpush1.msra.mxu0 0.0
    %1261 = vmatprep.mubr.f32.mxu0 0.0
    %v1262 = vand.u32 %v1190, 4294901760
    %v1263 = vsub.f32 %v1190, %v1262
    %v1264 = vand.u32 %v1263, 4294901760
    %v1265 = vsub.f32 %v1263, %v1264
    %v1266 = vand.u32 %v1265, 4294901760
    %1267 = vmatmul.mubr.f32.gmra.mrb[0].mxu0 %v1266
    %v1268 = vpop.f32.mrb[0].mxu0
    %v1269 = vadd.f32 %v1173, %v1268
    %v1270 = vpop.f32.mrb[0].mxu0
    %1271 = vdwg.mxu0
    %1272 = vmatprep.subr.mxu0 0.0
    %v1273 = vand.u32 %v1194, 4294901760
    %v1274 = vsub.f32 %v1194, %v1273
    %v1275 = vand.u32 %v1274, 4294901760
    %v1276 = vsub.f32 %v1274, %v1275
    %v1277 = vand.u32 %v1276, 4294901760
    %1278 = vmatpush1.msra.mxu0 %v1277
    %1279 = vmatprep.subr.mxu0 0.0
    %1280 = vmatpush1.msra.mxu0 0.0
    %1281 = vmatprep.subr.mxu0 0.0
    %1282 = vmatpush1.msra.mxu0 0.0
    %1283 = vmatprep.subr.mxu0 0.0
    %1284 = vmatpush1.msra.mxu0 0.0
    %1285 = vmatprep.subr.mxu0 0.0
    %1286 = vmatpush1.msra.mxu0 0.0
    %1287 = vmatprep.subr.mxu0 0.0
    %1288 = vmatpush1.msra.mxu0 0.0
    %1289 = vmatprep.subr.mxu0 0.0
    %1290 = vmatpush1.msra.mxu0 0.0
    %1291 = vmatprep.subr.mxu0 0.0
    %1292 = vmatpush1.msra.mxu0 0.0
    %1293 = vmatprep.subr.mxu0 0.0
    %1294 = vmatpush1.msra.mxu0 0.0
    %1295 = vmatprep.subr.mxu0 0.0
    %1296 = vmatpush1.msra.mxu0 0.0
    %1297 = vmatprep.subr.mxu0 0.0
    %1298 = vmatpush1.msra.mxu0 0.0
    %1299 = vmatprep.subr.mxu0 0.0
    %1300 = vmatpush1.msra.mxu0 0.0
    %1301 = vmatprep.subr.mxu0 0.0
    %1302 = vmatpush1.msra.mxu0 0.0
    %1303 = vmatprep.subr.mxu0 0.0
    %1304 = vmatpush1.msra.mxu0 0.0
    %1305 = vmatprep.subr.mxu0 0.0
    %1306 = vmatpush1.msra.mxu0 0.0
    %1307 = vmatprep.subr.mxu0 0.0
    %1308 = vmatpush1.msra.mxu0 0.0
    %1309 = vmatprep.subr.mxu0 0.0
    %1310 = vmatpush1.msra.mxu0 0.0
    %1311 = vmatprep.subr.mxu0 0.0
    %1312 = vmatpush1.msra.mxu0 0.0
    %1313 = vmatprep.subr.mxu0 0.0
    %1314 = vmatpush1.msra.mxu0 0.0
    %1315 = vmatprep.subr.mxu0 0.0
    %1316 = vmatpush1.msra.mxu0 0.0
    %1317 = vmatprep.subr.mxu0 0.0
    %1318 = vmatpush1.msra.mxu0 0.0
    %1319 = vmatprep.subr.mxu0 0.0
    %1320 = vmatpush1.msra.mxu0 0.0
    %1321 = vmatprep.subr.mxu0 0.0
    %1322 = vmatpush1.msra.mxu0 0.0
    %1323 = vmatprep.subr.mxu0 0.0
    %1324 = vmatpush1.msra.mxu0 0.0
    %1325 = vmatprep.subr.mxu0 0.0
    %1326 = vmatpush1.msra.mxu0 0.0
    %1327 = vmatprep.subr.mxu0 0.0
    %1328 = vmatpush1.msra.mxu0 0.0
    %1329 = vmatprep.subr.mxu0 0.0
    %1330 = vmatpush1.msra.mxu0 0.0
    %1331 = vmatprep.subr.mxu0 0.0
    %1332 = vmatpush1.msra.mxu0 0.0
    %1333 = vmatprep.subr.mxu0 0.0
    %1334 = vmatpush1.msra.mxu0 0.0
    %1335 = vmatprep.subr.mxu0 0.0
    %1336 = vmatpush1.msra.mxu0 0.0
    %1337 = vmatprep.subr.mxu0 0.0
    %1338 = vmatpush1.msra.mxu0 0.0
    %1339 = vmatprep.subr.mxu0 0.0
    %1340 = vmatpush1.msra.mxu0 0.0
    %1341 = vmatprep.mubr.f32.mxu0 0.0
    %v1342 = vand.u32 %v1190, 4294901760
    %1343 = vmatmul.mubr.f32.gmra.mrb[0].mxu0 %v1342
    %v1344 = vpop.f32.mrb[0].mxu0
    %v1345 = vadd.f32 %v1269, %v1344
    %v1346 = vpop.f32.mrb[0].mxu0
    %1347 = vdwg.mxu0
    %1348 = vmatprep.subr.mxu0 0.0
    %v1349 = vand.u32 %v1194, 4294901760
    %v1350 = vsub.f32 %v1194, %v1349
    %1351 = vmatpush1.msra.mxu0 %v1350
    %1352 = vmatprep.subr.mxu0 0.0
    %1353 = vmatpush1.msra.mxu0 0.0
    %1354 = vmatprep.subr.mxu0 0.0
    %1355 = vmatpush1.msra.mxu0 0.0
    %1356 = vmatprep.subr.mxu0 0.0
    %1357 = vmatpush1.msra.mxu0 0.0
    %1358 = vmatprep.subr.mxu0 0.0
    %1359 = vmatpush1.msra.mxu0 0.0
    %1360 = vmatprep.subr.mxu0 0.0
    %1361 = vmatpush1.msra.mxu0 0.0
    %1362 = vmatprep.subr.mxu0 0.0
    %1363 = vmatpush1.msra.mxu0 0.0
    %1364 = vmatprep.subr.mxu0 0.0
    %1365 = vmatpush1.msra.mxu0 0.0
    %1366 = vmatprep.subr.mxu0 0.0
    %1367 = vmatpush1.msra.mxu0 0.0
    %1368 = vmatprep.subr.mxu0 0.0
    %1369 = vmatpush1.msra.mxu0 0.0
    %1370 = vmatprep.subr.mxu0 0.0
    %1371 = vmatpush1.msra.mxu0 0.0
    %1372 = vmatprep.subr.mxu0 0.0
    %1373 = vmatpush1.msra.mxu0 0.0
    %1374 = vmatprep.subr.mxu0 0.0
    %1375 = vmatpush1.msra.mxu0 0.0
    %1376 = vmatprep.subr.mxu0 0.0
    %1377 = vmatpush1.msra.mxu0 0.0
    %1378 = vmatprep.subr.mxu0 0.0
    %1379 = vmatpush1.msra.mxu0 0.0
    %1380 = vmatprep.subr.mxu0 0.0
    %1381 = vmatpush1.msra.mxu0 0.0
    %1382 = vmatprep.subr.mxu0 0.0
    %1383 = vmatpush1.msra.mxu0 0.0
    %1384 = vmatprep.subr.mxu0 0.0
    %1385 = vmatpush1.msra.mxu0 0.0
    %1386 = vmatprep.subr.mxu0 0.0
    %1387 = vmatpush1.msra.mxu0 0.0
    %1388 = vmatprep.subr.mxu0 0.0
    %1389 = vmatpush1.msra.mxu0 0.0
    %1390 = vmatprep.subr.mxu0 0.0
    %1391 = vmatpush1.msra.mxu0 0.0
    %1392 = vmatprep.subr.mxu0 0.0
    %1393 = vmatpush1.msra.mxu0 0.0
    %1394 = vmatprep.subr.mxu0 0.0
    %1395 = vmatpush1.msra.mxu0 0.0
    %1396 = vmatprep.subr.mxu0 0.0
    %1397 = vmatpush1.msra.mxu0 0.0
    %1398 = vmatprep.subr.mxu0 0.0
    %1399 = vmatpush1.msra.mxu0 0.0
    %1400 = vmatprep.subr.mxu0 0.0
    %1401 = vmatpush1.msra.mxu0 0.0
    %1402 = vmatprep.subr.mxu0 0.0
    %1403 = vmatpush1.msra.mxu0 0.0
    %1404 = vmatprep.subr.mxu0 0.0
    %1405 = vmatpush1.msra.mxu0 0.0
    %1406 = vmatprep.subr.mxu0 0.0
    %1407 = vmatpush1.msra.mxu0 0.0
    %1408 = vmatprep.subr.mxu0 0.0
    %1409 = vmatpush1.msra.mxu0 0.0
    %1410 = vmatprep.subr.mxu0 0.0
    %1411 = vmatpush1.msra.mxu0 0.0
    %1412 = vmatprep.subr.mxu0 0.0
    %1413 = vmatpush1.msra.mxu0 0.0
    %1414 = vmatprep.mubr.f32.mxu0 0.0
    %v1415 = vand.u32 %v1190, 4294901760
    %v1416 = vsub.f32 %v1190, %v1415
    %1417 = vmatmul.mubr.f32.gmra.mrb[0].mxu0 %v1416
    %v1418 = vpop.f32.mrb[0].mxu0
    %v1419 = vadd.f32 %v1345, %v1418
    %v1420 = vpop.f32.mrb[0].mxu0
    %1421 = vdwg.mxu0
    %1422 = vmatprep.subr.mxu0 0.0
    %v1423 = vand.u32 %v1194, 4294901760
    %1424 = vmatpush1.msra.mxu0 %v1423
    %1425 = vmatprep.subr.mxu0 0.0
    %1426 = vmatpush1.msra.mxu0 0.0
    %1427 = vmatprep.subr.mxu0 0.0
    %1428 = vmatpush1.msra.mxu0 0.0
    %1429 = vmatprep.subr.mxu0 0.0
    %1430 = vmatpush1.msra.mxu0 0.0
    %1431 = vmatprep.subr.mxu0 0.0
    %1432 = vmatpush1.msra.mxu0 0.0
    %1433 = vmatprep.subr.mxu0 0.0
    %1434 = vmatpush1.msra.mxu0 0.0
    %1435 = vmatprep.subr.mxu0 0.0
    %1436 = vmatpush1.msra.mxu0 0.0
    %1437 = vmatprep.subr.mxu0 0.0
    %1438 = vmatpush1.msra.mxu0 0.0
    %1439 = vmatprep.subr.mxu0 0.0
    %1440 = vmatpush1.msra.mxu0 0.0
    %1441 = vmatprep.subr.mxu0 0.0
    %1442 = vmatpush1.msra.mxu0 0.0
    %1443 = vmatprep.subr.mxu0 0.0
    %1444 = vmatpush1.msra.mxu0 0.0
    %1445 = vmatprep.subr.mxu0 0.0
    %1446 = vmatpush1.msra.mxu0 0.0
    %1447 = vmatprep.subr.mxu0 0.0
    %1448 = vmatpush1.msra.mxu0 0.0
    %1449 = vmatprep.subr.mxu0 0.0
    %1450 = vmatpush1.msra.mxu0 0.0
    %1451 = vmatprep.subr.mxu0 0.0
    %1452 = vmatpush1.msra.mxu0 0.0
    %1453 = vmatprep.subr.mxu0 0.0
    %1454 = vmatpush1.msra.mxu0 0.0
    %1455 = vmatprep.subr.mxu0 0.0
    %1456 = vmatpush1.msra.mxu0 0.0
    %1457 = vmatprep.subr.mxu0 0.0
    %1458 = vmatpush1.msra.mxu0 0.0
    %1459 = vmatprep.subr.mxu0 0.0
    %1460 = vmatpush1.msra.mxu0 0.0
    %1461 = vmatprep.subr.mxu0 0.0
    %1462 = vmatpush1.msra.mxu0 0.0
    %1463 = vmatprep.subr.mxu0 0.0
    %1464 = vmatpush1.msra.mxu0 0.0
    %1465 = vmatprep.subr.mxu0 0.0
    %1466 = vmatpush1.msra.mxu0 0.0
    %1467 = vmatprep.subr.mxu0 0.0
    %1468 = vmatpush1.msra.mxu0 0.0
    %1469 = vmatprep.subr.mxu0 0.0
    %1470 = vmatpush1.msra.mxu0 0.0
    %1471 = vmatprep.subr.mxu0 0.0
    %1472 = vmatpush1.msra.mxu0 0.0
    %1473 = vmatprep.subr.mxu0 0.0
    %1474 = vmatpush1.msra.mxu0 0.0
    %1475 = vmatprep.subr.mxu0 0.0
    %1476 = vmatpush1.msra.mxu0 0.0
    %1477 = vmatprep.subr.mxu0 0.0
    %1478 = vmatpush1.msra.mxu0 0.0
    %1479 = vmatprep.subr.mxu0 0.0
    %1480 = vmatpush1.msra.mxu0 0.0
    %1481 = vmatprep.subr.mxu0 0.0
    %1482 = vmatpush1.msra.mxu0 0.0
    %1483 = vmatprep.subr.mxu0 0.0
    %1484 = vmatpush1.msra.mxu0 0.0
    %1485 = vmatprep.subr.mxu0 0.0
    %1486 = vmatpush1.msra.mxu0 0.0
    %1487 = vmatprep.mubr.f32.mxu0 0.0
    %v1488 = vand.u32 %v1190, 4294901760
    %v1489 = vsub.f32 %v1190, %v1488
    %v1490 = vand.u32 %v1489, 4294901760
    %1491 = vmatmul.mubr.f32.gmra.mrb[0].mxu0 %v1490
    %v1492 = vpop.f32.mrb[0].mxu0
    %v1493 = vadd.f32 %v1419, %v1492
    %v1494 = vpop.f32.mrb[0].mxu0
    %1495 = vdwg.mxu0
    %1496 = vmatprep.subr.mxu0 0.0
    %v1497 = vand.u32 %v1194, 4294901760
    %v1498 = vsub.f32 %v1194, %v1497
    %v1499 = vand.u32 %v1498, 4294901760
    %1500 = vmatpush1.msra.mxu0 %v1499
    %1501 = vmatprep.subr.mxu0 0.0
    %1502 = vmatpush1.msra.mxu0 0.0
    %1503 = vmatprep.subr.mxu0 0.0
    %1504 = vmatpush1.msra.mxu0 0.0
    %1505 = vmatprep.subr.mxu0 0.0
    %1506 = vmatpush1.msra.mxu0 0.0
    %1507 = vmatprep.subr.mxu0 0.0
    %1508 = vmatpush1.msra.mxu0 0.0
    %1509 = vmatprep.subr.mxu0 0.0
    %1510 = vmatpush1.msra.mxu0 0.0
    %1511 = vmatprep.subr.mxu0 0.0
    %1512 = vmatpush1.msra.mxu0 0.0
    %1513 = vmatprep.subr.mxu0 0.0
    %1514 = vmatpush1.msra.mxu0 0.0
    %1515 = vmatprep.subr.mxu0 0.0
    %1516 = vmatpush1.msra.mxu0 0.0
    %1517 = vmatprep.subr.mxu0 0.0
    %1518 = vmatpush1.msra.mxu0 0.0
    %1519 = vmatprep.subr.mxu0 0.0
    %1520 = vmatpush1.msra.mxu0 0.0
    %1521 = vmatprep.subr.mxu0 0.0
    %1522 = vmatpush1.msra.mxu0 0.0
    %1523 = vmatprep.subr.mxu0 0.0
    %1524 = vmatpush1.msra.mxu0 0.0
    %1525 = vmatprep.subr.mxu0 0.0
    %1526 = vmatpush1.msra.mxu0 0.0
    %1527 = vmatprep.subr.mxu0 0.0
    %1528 = vmatpush1.msra.mxu0 0.0
    %1529 = vmatprep.subr.mxu0 0.0
    %1530 = vmatpush1.msra.mxu0 0.0
    %1531 = vmatprep.subr.mxu0 0.0
    %1532 = vmatpush1.msra.mxu0 0.0
    %1533 = vmatprep.subr.mxu0 0.0
    %1534 = vmatpush1.msra.mxu0 0.0
    %1535 = vmatprep.subr.mxu0 0.0
    %1536 = vmatpush1.msra.mxu0 0.0
    %1537 = vmatprep.subr.mxu0 0.0
    %1538 = vmatpush1.msra.mxu0 0.0
    %1539 = vmatprep.subr.mxu0 0.0
    %1540 = vmatpush1.msra.mxu0 0.0
    %1541 = vmatprep.subr.mxu0 0.0
    %1542 = vmatpush1.msra.mxu0 0.0
    %1543 = vmatprep.subr.mxu0 0.0
    %1544 = vmatpush1.msra.mxu0 0.0
    %1545 = vmatprep.subr.mxu0 0.0
    %1546 = vmatpush1.msra.mxu0 0.0
    %1547 = vmatprep.subr.mxu0 0.0
    %1548 = vmatpush1.msra.mxu0 0.0
    %1549 = vmatprep.subr.mxu0 0.0
    %1550 = vmatpush1.msra.mxu0 0.0
    %1551 = vmatprep.subr.mxu0 0.0
    %1552 = vmatpush1.msra.mxu0 0.0
    %1553 = vmatprep.subr.mxu0 0.0
    %1554 = vmatpush1.msra.mxu0 0.0
    %1555 = vmatprep.subr.mxu0 0.0
    %1556 = vmatpush1.msra.mxu0 0.0
    %1557 = vmatprep.subr.mxu0 0.0
    %1558 = vmatpush1.msra.mxu0 0.0
    %1559 = vmatprep.subr.mxu0 0.0
    %1560 = vmatpush1.msra.mxu0 0.0
    %1561 = vmatprep.subr.mxu0 0.0
    %1562 = vmatpush1.msra.mxu0 0.0
    %1563 = vmatprep.mubr.f32.mxu0 0.0
    %v1564 = vand.u32 %v1190, 4294901760
    %1565 = vmatmul.mubr.f32.gmra.mrb[0].mxu0 %v1564
    %v1566 = vpop.f32.mrb[0].mxu0
    %v1567 = vadd.f32 %v1493, %v1566
    %v1568 = vpop.f32.mrb[0].mxu0
    %1569 = vdwg.mxu0
    %1570 = vmatprep.subr.mxu0 0.0
    %v1571 = vand.u32 %v1194, 4294901760
    %1572 = vmatpush1.msra.mxu0 %v1571
    %1573 = vmatprep.subr.mxu0 0.0
    %1574 = vmatpush1.msra.mxu0 0.0
    %1575 = vmatprep.subr.mxu0 0.0
    %1576 = vmatpush1.msra.mxu0 0.0
    %1577 = vmatprep.subr.mxu0 0.0
    %1578 = vmatpush1.msra.mxu0 0.0
    %1579 = vmatprep.subr.mxu0 0.0
    %1580 = vmatpush1.msra.mxu0 0.0
    %1581 = vmatprep.subr.mxu0 0.0
    %1582 = vmatpush1.msra.mxu0 0.0
    %1583 = vmatprep.subr.mxu0 0.0
    %1584 = vmatpush1.msra.mxu0 0.0
    %1585 = vmatprep.subr.mxu0 0.0
    %1586 = vmatpush1.msra.mxu0 0.0
    %1587 = vmatprep.subr.mxu0 0.0
    %1588 = vmatpush1.msra.mxu0 0.0
    %1589 = vmatprep.subr.mxu0 0.0
    %1590 = vmatpush1.msra.mxu0 0.0
    %1591 = vmatprep.subr.mxu0 0.0
    %1592 = vmatpush1.msra.mxu0 0.0
    %1593 = vmatprep.subr.mxu0 0.0
    %1594 = vmatpush1.msra.mxu0 0.0
    %1595 = vmatprep.subr.mxu0 0.0
    %1596 = vmatpush1.msra.mxu0 0.0
    %1597 = vmatprep.subr.mxu0 0.0
    %1598 = vmatpush1.msra.mxu0 0.0
    %1599 = vmatprep.subr.mxu0 0.0
    %1600 = vmatpush1.msra.mxu0 0.0
    %1601 = vmatprep.subr.mxu0 0.0
    %1602 = vmatpush1.msra.mxu0 0.0
    %1603 = vmatprep.subr.mxu0 0.0
    %1604 = vmatpush1.msra.mxu0 0.0
    %1605 = vmatprep.subr.mxu0 0.0
    %1606 = vmatpush1.msra.mxu0 0.0
    %1607 = vmatprep.subr.mxu0 0.0
    %1608 = vmatpush1.msra.mxu0 0.0
    %1609 = vmatprep.subr.mxu0 0.0
    %1610 = vmatpush1.msra.mxu0 0.0
    %1611 = vmatprep.subr.mxu0 0.0
    %1612 = vmatpush1.msra.mxu0 0.0
    %1613 = vmatprep.subr.mxu0 0.0
    %1614 = vmatpush1.msra.mxu0 0.0
    %1615 = vmatprep.subr.mxu0 0.0
    %1616 = vmatpush1.msra.mxu0 0.0
    %1617 = vmatprep.subr.mxu0 0.0
    %1618 = vmatpush1.msra.mxu0 0.0
    %1619 = vmatprep.subr.mxu0 0.0
    %1620 = vmatpush1.msra.mxu0 0.0
    %1621 = vmatprep.subr.mxu0 0.0
    %1622 = vmatpush1.msra.mxu0 0.0
    %1623 = vmatprep.subr.mxu0 0.0
    %1624 = vmatpush1.msra.mxu0 0.0
    %1625 = vmatprep.subr.mxu0 0.0
    %1626 = vmatpush1.msra.mxu0 0.0
    %1627 = vmatprep.subr.mxu0 0.0
    %1628 = vmatpush1.msra.mxu0 0.0
    %1629 = vmatprep.subr.mxu0 0.0
    %1630 = vmatpush1.msra.mxu0 0.0
    %1631 = vmatprep.subr.mxu0 0.0
    %1632 = vmatpush1.msra.mxu0 0.0
    %1633 = vmatprep.subr.mxu0 0.0
    %1634 = vmatpush1.msra.mxu0 0.0
    %1635 = vmatprep.mubr.f32.mxu0 0.0
    %v1636 = vand.u32 %v1190, 4294901760
    %1637 = vmatmul.mubr.f32.gmra.mrb[0].mxu0 %v1636
    %v1638 = vpop.f32.mrb[0].mxu0
    %v1639 = vadd.f32 %v1567, %v1638
    %v1640 = vpop.f32.mrb[0].mxu0
    %1641 = vdwg.mxu0
    %v1642 = vadd.f32 %v1639, %v30
    %vm1643 = vcmask 254976
    %1644 = vst.msk [vmem:[#allocation2] sm:$0x3] %vm1643, %v1642
    // Predicated region
    $region34: #{cross_attention_block.1} parent=1 // pred_check
      _
    $region35: #{cross_attention_block.1} parent=1 // pred_check_branch
      %1646 = sbr.rel (0) target = $region37
    $region36: #{cross_attention_block.1} parent=1 // pred_region
      %s1648 = ssub.s32 32, 32
      %1649 = vsyncadd [#allocation3], %s1648
      %s1651 = sshll.u32 [#allocation2], 4
      %s1652 = int_to_ptr.vmem [resolvable:$true] %s1651
      %1654 = dma.vmem_to_hbm [thread:$0]  %s1652, 32, %s8, [#allocation3]
    $region37: #{cross_attention_block.1} parent=1 // pred_fallthru
      _
    // Predicated region
    $region38: #{cross_attention_block.1} parent=1 // pred_check
      _
    $region39: #{cross_attention_block.1} parent=1 // pred_check_branch
      %1656 = sbr.rel (0) target = $region41
    $region40: #{cross_attention_block.1} parent=1 // pred_region
      %1657 = dma.done [#allocation3], 32
    $region41: #{cross_attention_block.1} parent=1 // pred_fallthru
      _
    %1658 = vsyncpa [#allocation3], 1

</llo_original>
